<compile_context>
chip_gen: v7x
topology: tpu7x:2x2x1
jax: 0.10.0
libtpu: 0.0.40
codegen_flags: <defaults>
</compile_context>

<pallas_src>
import functools

import jax
import jax.numpy as jnp
from jax import lax
from jax.experimental import pallas as pl
from jax.experimental.pallas import tpu as pltpu

EPS = 1e-6                       # Llama rms_norm_eps
VMEM_LIMIT = 64 * 1024 * 1024    # explicit scoped-VMEM budget (<= physical on v5e/v6e/v7x)


# ----------------------------- kernels -----------------------------

def norm_linear_kernel(x_ref, ln_ref, w_ref, o_ref, xn_ref):
    """y[m, n] = RMSNorm(x[m]) @ W[:, n]; normalized x cached across the N sweep.

    NOTE: correctness of xn_ref caching relies on the N grid axis being innermost and
    'arbitrary'."""
    @pl.when(pl.program_id(1) == 0)
    def _():
        x = x_ref[...].astype(jnp.float32)                     # (TM, D)
        var = jnp.mean(x * x, axis=-1, keepdims=True)
        h = x * lax.rsqrt(var + EPS)
        # HF LlamaRMSNorm: weight * hidden.to(bf16)
        xn_ref[...] = h.astype(jnp.bfloat16) * ln_ref[...]
    o_ref[...] = jnp.dot(xn_ref[...], w_ref[...],
                         preferred_element_type=jnp.float32).astype(o_ref.dtype)


def rmsnorm_kernel(x_ref, ln_ref, o_ref):
    """Standalone RMSNorm pre-pass (used before the weight-stationary lm_head matmul)."""
    x = x_ref[...].astype(jnp.float32)
    var = jnp.mean(x * x, axis=-1, keepdims=True)
    h = x * lax.rsqrt(var + EPS)
    o_ref[...] = h.astype(jnp.bfloat16) * ln_ref[...]


def matmul_kernel(x_ref, w_ref, o_ref):
    """Plain y[m, n] = x[m] @ W[:, n] (used weight-stationary for lm_head)."""
    o_ref[...] = jnp.dot(x_ref[...], w_ref[...],
                         preferred_element_type=jnp.float32).astype(o_ref.dtype)


def matmul_residual_kernel(a_ref, w_ref, r_ref, o_ref):
    """y[m, n] = resid[m, n] + a[m] @ W[:, n]  (o_proj + residual add)."""
    y = jnp.dot(a_ref[...], w_ref[...], preferred_element_type=jnp.float32)
    o_ref[...] = (r_ref[...].astype(jnp.float32) + y).astype(o_ref.dtype)


def swiglu_matmul_residual_kernel(g_ref, u_ref, wd_ref, r_ref, o_ref, acc_ref):
    """y[m, n] = resid[m, n] + sum_ki (SiLU(g[m, ki]) * u[m, ki]) @ Wd[ki, n].

    K-tiled over the intermediate dim -> stays small in VMEM at real Llama sizes."""
    ki = pl.program_id(2)

    @pl.when(ki == 0)
    def _():
        acc_ref[...] = r_ref[...].astype(jnp.float32)

    g = g_ref[...].astype(jnp.float32)
    u = u_ref[...].astype(jnp.float32)
    act = (g * jax.nn.sigmoid(g) * u).astype(jnp.bfloat16)
    acc_ref[...] += jnp.dot(act, wd_ref[...], preferred_element_type=jnp.float32)

    @pl.when(ki == pl.num_programs(2) - 1)
    def _():
        o_ref[...] = acc_ref[...].astype(o_ref.dtype)


def rope_qkv_kernel(x_ref, cos_ref, sin_ref, o_ref, *, num_heads, sm_scale):
    """Rotate Q/K head-segments of the fused (T, 3D) qkv buffer once per layer.

    Column-tile c: c < H -> Q head (rotate + fold softmax scale), H <= c < 2H -> K head
    (rotate), c >= 2H -> V head (pass through)."""
    c = pl.program_id(1)
    x = x_ref[...].astype(jnp.float32)                         # (TM, hd)
    cos = cos_ref[...].astype(jnp.float32)
    sin = sin_ref[...].astype(jnp.float32)
    half = x.shape[1] // 2
    rot = jnp.concatenate([-x[:, half:], x[:, :half]], axis=1)  # HF rotate_half
    xr = x * cos + rot * sin
    is_q = c < num_heads
    is_v = c >= 2 * num_heads
    scale = jnp.where(is_q, sm_scale, 1.0)
    out = jnp.where(is_v, x, xr * scale)
    o_ref[...] = out.astype(o_ref.dtype)


def attention_kernel(q_ref, k_ref, v_ref, o_ref, m_ref, l_ref, acc_ref):
    """Causal flash attention for one (batch, head, q-tile); kv tiles innermost.

    Q is already RoPE-rotated and softmax-scaled; K is already RoPE-rotated."""
    qi = pl.program_id(2)
    kv = pl.program_id(3)
    tq = q_ref.shape[0]
    tkv = k_ref.shape[0]

    @pl.when(kv == 0)
    def _():
        m_ref[...] = jnp.full_like(m_ref, -jnp.inf)
        l_ref[...] = jnp.zeros_like(l_ref)
        acc_ref[...] = jnp.zeros_like(acc_ref)

    # Skip KV blocks that lie entirely above the causal diagonal (also not DMA'd:
    # the k/v index maps clamp to the diagonal block).
    @pl.when(kv * tkv <= qi * tq + (tq - 1))
    def _():
        q = q_ref[...]                                         # (tq, hd) bf16
        k = k_ref[...]                                         # (tkv, hd) bf16
        s = lax.dot_general(q, k, (((1,), (1,)), ((), ())),
                            preferred_element_type=jnp.float32)  # (tq, tkv)
        qpos = qi * tq + lax.broadcasted_iota(jnp.int32, (tq, tkv), 0)
        kpos = kv * tkv + lax.broadcasted_iota(jnp.int32, (tq, tkv), 1)
        s = jnp.where(qpos >= kpos, s, -1e30)

        m_prev = m_ref[...]
        m_new = jnp.maximum(m_prev, s.max(axis=-1, keepdims=True))
        alpha = jnp.exp(m_prev - m_new)
        p = jnp.exp(s - m_new)
        l_ref[...] = alpha * l_ref[...] + p.sum(axis=-1, keepdims=True)
        acc_ref[...] = alpha * acc_ref[...] + jnp.dot(
            p.astype(jnp.bfloat16), v_ref[...], preferred_element_type=jnp.float32)
        m_ref[...] = m_new

    @pl.when(kv == pl.num_programs(3) - 1)
    def _():
        o_ref[...] = (acc_ref[...] / l_ref[...]).astype(o_ref.dtype)


# ----------------------------- wrappers -----------------------------

def _pick(n, pref):
    t = min(pref, n)
    assert n % t == 0, f"dim {n} not divisible by tile {t}"
    return t


def norm_linear(x, ln_w, w, *, tm=256, tn=256):
    # tm/tn tunable per generation (raise tm to 512 on v6e for better weight reuse).
    T, D = x.shape
    N = w.shape[1]
    tm, tn = _pick(T, tm), _pick(N, tn)
    return pl.pallas_call(
        norm_linear_kernel,
        out_shape=jax.ShapeDtypeStruct((T, N), jnp.bfloat16),
        grid=(T // tm, N // tn),
        in_specs=[
            pl.BlockSpec((tm, D), lambda m, n: (m, 0)),
            pl.BlockSpec((1, D), lambda m, n: (0, 0)),
            pl.BlockSpec((D, tn), lambda m, n: (0, n)),
        ],
        out_specs=pl.BlockSpec((tm, tn), lambda m, n: (m, n)),
        scratch_shapes=[pltpu.VMEM((tm, D), jnp.bfloat16)],
        compiler_params=pltpu.CompilerParams(
            dimension_semantics=("parallel", "arbitrary"),
            vmem_limit_bytes=VMEM_LIMIT),
        cost_estimate=pl.CostEstimate(
            flops=2 * T * D * N, transcendentals=T,
            bytes_accessed=2 * (T * D + D * N + T * N)),
    )(x, ln_w, w)


def rmsnorm(x, ln_w, *, tm=256):
    T, D = x.shape
    tm = _pick(T, tm)
    return pl.pallas_call(
        rmsnorm_kernel,
        out_shape=jax.ShapeDtypeStruct((T, D), jnp.bfloat16),
        grid=(T // tm,),
        in_specs=[
            pl.BlockSpec((tm, D), lambda m: (m, 0)),
            pl.BlockSpec((1, D), lambda m: (0, 0)),
        ],
        out_specs=pl.BlockSpec((tm, D), lambda m: (m, 0)),
        compiler_params=pltpu.CompilerParams(
            dimension_semantics=("parallel",),
            vmem_limit_bytes=VMEM_LIMIT),
    )(x, ln_w)


def linear_vocab_stationary(x, w, *, tm=256, tn=256, out_dtype=jnp.float32):
    """lm_head matmul with the vocab axis OUTERMOST -> each (D, tn) weight tile is
    fetched exactly once; the (small) activation tile is re-streamed instead."""
    T, D = x.shape
    N = w.shape[1]
    tm, tn = _pick(T, tm), _pick(N, tn)
    return pl.pallas_call(
        matmul_kernel,
        out_shape=jax.ShapeDtypeStruct((T, N), out_dtype),
        grid=(N // tn, T // tm),
        in_specs=[
            pl.BlockSpec((tm, D), lambda n, m: (m, 0)),
            pl.BlockSpec((D, tn), lambda n, m: (0, n)),   # constant across the m sweep
        ],
        out_specs=pl.BlockSpec((tm, tn), lambda n, m: (m, n)),
        compiler_params=pltpu.CompilerParams(
            dimension_semantics=("parallel", "parallel"),
            vmem_limit_bytes=VMEM_LIMIT),
        cost_estimate=pl.CostEstimate(
            flops=2 * T * D * N, transcendentals=0,
            bytes_accessed=2 * (T * D + D * N) + 4 * T * N),
    )(x, w)


def matmul_residual(a, w, resid, *, tm=256, tn=256):
    T, K = a.shape
    N = w.shape[1]
    tm, tn = _pick(T, tm), _pick(N, tn)
    return pl.pallas_call(
        matmul_residual_kernel,
        out_shape=jax.ShapeDtypeStruct((T, N), jnp.bfloat16),
        grid=(T // tm, N // tn),
        in_specs=[
            pl.BlockSpec((tm, K), lambda m, n: (m, 0)),
            pl.BlockSpec((K, tn), lambda m, n: (0, n)),
            pl.BlockSpec((tm, tn), lambda m, n: (m, n)),
        ],
        out_specs=pl.BlockSpec((tm, tn), lambda m, n: (m, n)),
        compiler_params=pltpu.CompilerParams(
            dimension_semantics=("parallel", "parallel"),
            vmem_limit_bytes=VMEM_LIMIT),
        cost_estimate=pl.CostEstimate(
            flops=2 * T * K * N, transcendentals=0,
            bytes_accessed=2 * (T * K + K * N + 2 * T * N)),
    )(a, w, resid)


def swiglu_matmul_residual(gu, w_down, resid, *, tm=256, tn=256, tki=256):
    T, two_i = gu.shape
    inter = two_i // 2
    N = w_down.shape[1]
    tm, tn, tki = _pick(T, tm), _pick(N, tn), _pick(inter, tki)
    nki = inter // tki
    return pl.pallas_call(
        swiglu_matmul_residual_kernel,
        out_shape=jax.ShapeDtypeStruct((T, N), jnp.bfloat16),
        grid=(T // tm, N // tn, nki),
        in_specs=[
            # gate and up column ranges of the SAME fused gu array, K-chunk ki.
            pl.BlockSpec((tm, tki), lambda m, n, ki: (m, ki)),
            pl.BlockSpec((tm, tki), lambda m, n, ki: (m, nki + ki)),
            pl.BlockSpec((tki, tn), lambda m, n, ki: (ki, n)),
            pl.BlockSpec((tm, tn), lambda m, n, ki: (m, n)),
        ],
        out_specs=pl.BlockSpec((tm, tn), lambda m, n, ki: (m, n)),
        scratch_shapes=[pltpu.VMEM((tm, tn), jnp.float32)],
        compiler_params=pltpu.CompilerParams(
            dimension_semantics=("parallel", "parallel", "arbitrary"),
            vmem_limit_bytes=VMEM_LIMIT),
        cost_estimate=pl.CostEstimate(
            flops=2 * T * inter * N + 6 * T * inter,
            transcendentals=T * inter,
            bytes_accessed=2 * (T * two_i + inter * N + 2 * T * N)),
    )(gu, gu, w_down, resid)


def rope_qkv(qkv, cos, sin, *, num_heads, head_dim, seq_len, sm_scale, tm=256):
    """Rotate Q/K segments of the fused (T, 3D) qkv buffer, fold softmax scale into Q."""
    T, three_d = qkv.shape
    assert three_d == 3 * num_heads * head_dim
    tm = _pick(T, min(tm, seq_len))
    assert seq_len % tm == 0
    n_pos = seq_len // tm                 # cos/sin row-block index = m % n_pos
    n_col = three_d // head_dim           # one head-segment per column tile
    kern = functools.partial(rope_qkv_kernel, num_heads=num_heads, sm_scale=sm_scale)
    return pl.pallas_call(
        kern,
        out_shape=jax.ShapeDtypeStruct((T, three_d), jnp.bfloat16),
        grid=(T // tm, n_col),
        in_specs=[
            pl.BlockSpec((tm, head_dim), lambda m, c: (m, c)),
            pl.BlockSpec((tm, head_dim), lambda m, c: (m % n_pos, 0)),
            pl.BlockSpec((tm, head_dim), lambda m, c: (m % n_pos, 0)),
        ],
        out_specs=pl.BlockSpec((tm, head_dim), lambda m, c: (m, c)),
        compiler_params=pltpu.CompilerParams(
            dimension_semantics=("parallel", "parallel"),
            vmem_limit_bytes=VMEM_LIMIT),
    )(qkv, cos, sin)


def flash_attention(qkv_rot, *, batch, seq_len, num_heads, head_dim, tq=128, tkv=128):
    """Causal flash attention reading Q/K/V column slices straight from the (T, 3D)
    fused buffer and writing (T, H*hd) output -> no XLA transpose glue.
    tq/tkv tunable per generation (256 fills the 2x256^2 MXU on v6e/v7x)."""
    B, S, H, hd = batch, seq_len, num_heads, head_dim
    D = H * hd
    T = B * S
    tq, tkv = _pick(S, tq), _pick(S, tkv)
    nq, nkv = S // tq, S // tkv

    def q_map(b, h, qi, kv):
        return (b * nq + qi, h)

    def kv_row(b, qi, kv):
        # Clamp above-diagonal blocks to the diagonal block -> identical block index
        # means Pallas skips the re-DMA; compute for them is skipped by pl.when.
        return b * nkv + jnp.minimum(kv, (qi * tq + tq - 1) // tkv)

    def k_map(b, h, qi, kv):
        return (kv_row(b, qi, kv), H + h)

    def v_map(b, h, qi, kv):
        return (kv_row(b, qi, kv), 2 * H + h)

    return pl.pallas_call(
        attention_kernel,
        out_shape=jax.ShapeDtypeStruct((T, D), jnp.bfloat16),
        grid=(B, H, nq, nkv),
        in_specs=[
            pl.BlockSpec((tq, hd), q_map),
            pl.BlockSpec((tkv, hd), k_map),
            pl.BlockSpec((tkv, hd), v_map),
        ],
        out_specs=pl.BlockSpec((tq, hd), q_map),
        scratch_shapes=[
            pltpu.VMEM((tq, 1), jnp.float32),     # running max
            pltpu.VMEM((tq, 1), jnp.float32),     # running sum
            pltpu.VMEM((tq, hd), jnp.float32),    # output accumulator
        ],
        compiler_params=pltpu.CompilerParams(
            dimension_semantics=("parallel", "parallel", "parallel", "arbitrary"),
            vmem_limit_bytes=VMEM_LIMIT),
        cost_estimate=pl.CostEstimate(
            flops=2 * B * H * S * S * hd,          # ~causal half of qk^T + pv
            transcendentals=B * H * S * S // 2,
            bytes_accessed=2 * (T * 3 * D + T * D)),
    )(qkv_rot, qkv_rot, qkv_rot)


def rope_tables(seq_len, head_dim, theta=10000.0):
    inv_freq = 1.0 / (theta ** (jnp.arange(0, head_dim, 2, dtype=jnp.float32) / head_dim))
    pos = jnp.arange(seq_len, dtype=jnp.float32)
    freqs = pos[:, None] * inv_freq[None, :]
    emb = jnp.concatenate([freqs, freqs], axis=-1)               # (S, head_dim)
    return jnp.cos(emb).astype(jnp.bfloat16), jnp.sin(emb).astype(jnp.bfloat16)


# ----------------------------- parameter init (deterministic) -----------------------------

def init_params(key, *, vocab, hidden, num_heads, head_dim, intermediate, num_layers):
    def normal(k, shape):
        return (0.02 * jax.random.normal(k, shape, dtype=jnp.float32)).astype(jnp.bfloat16)

    qkv_out = num_heads * head_dim
    keys = jax.random.split(key, 2 + 4 * num_layers)
    params = {
        "embed": normal(keys[0], (vocab, hidden)),
        "lm_head": normal(keys[1], (hidden, vocab)),
        "final_ln": jnp.ones((1, hidden), jnp.bfloat16),
        "layers": [],
    }
    for li in range(num_layers):
        kqkv, ko, kgu, kd = keys[2 + 4 * li: 2 + 4 * (li + 1)]
        params["layers"].append({
            "ln1": jnp.ones((1, hidden), jnp.bfloat16),
            "ln2": jnp.ones((1, hidden), jnp.bfloat16),
            "w_qkv": normal(kqkv, (hidden, 3 * qkv_out)),           # fused [Wq | Wk | Wv]
            "wo": normal(ko, (qkv_out, hidden)),
            "w_gate_up": normal(kgu, (hidden, 2 * intermediate)),   # fused [Wgate | Wup]
            "w_down": normal(kd, (intermediate, hidden)),
        })
    return params


# ----------------------------- full forward (pp_rank 0 == last stage) -----------------------------

def dipaco_llama_forward(input_ids, labels, params, *, num_heads, head_dim, train=True):
    del labels, train  # TODO(synk): loss + micro-batch pipeline comm live in DiPaCoMicroBatching
    B, S = input_ids.shape
    D = num_heads * head_dim
    V = params["lm_head"].shape[1]
    sm_scale = 1.0 / (head_dim ** 0.5)

    x = jnp.take(params["embed"], input_ids, axis=0)            # (B, S, D) bf16 (glue: gather)
    cos, sin = rope_tables(S, head_dim)                         # rotary_emb tables (glue)
    x2 = x.reshape(B * S, D)                                    # token-flattened residual stream

    for lp in params["layers"]:                                 # LLamaLayerWrapper stack
        # --- self-attention block (no XLA transposes: all layout handled by BlockSpecs) ---
        qkv = norm_linear(x2, lp["ln1"], lp["w_qkv"])           # (T, 3D)
        qkv_rot = rope_qkv(qkv, cos, sin, num_heads=num_heads, head_dim=head_dim,
                           seq_len=S, sm_scale=sm_scale)        # Q/K rotated, Q pre-scaled
        attn2 = flash_attention(qkv_rot, batch=B, seq_len=S,
                                num_heads=num_heads, head_dim=head_dim)  # (T, D)
        x2 = matmul_residual(attn2, lp["wo"], x2)               # x + attn @ Wo

        # --- SwiGLU MLP block ---
        gu = norm_linear(x2, lp["ln2"], lp["w_gate_up"])        # (T, 2I)
        x2 = swiglu_matmul_residual(gu, lp["w_down"], x2)       # x + (SiLU(g)*u) @ Wd

    # final norm + output embeddings (last pipeline stage): weight-stationary lm_head,
    # f32 logits (matches HF LlamaForCausalLM logits dtype).
    xn = rmsnorm(x2, params["final_ln"])
    logits = linear_vocab_stationary(xn, params["lm_head"], out_dtype=jnp.float32)
    return logits.reshape(B, S, V)


# ----------------------------- main -----------------------------

if __name__ == "__main__":
    # small TPU-natural config: hidden=256, heads=2 (head_dim=128), intermediate=512,
    # vocab=512, 2 layers; batch=2, seq=256
    VOCAB, HIDDEN, HEADS, HEAD_DIM, INTER, LAYERS = 512, 256, 2, 128, 512, 2
    B, S = 2, 256

    root = jax.random.PRNGKey(0)
    k_params, k_ids, k_labels = jax.random.split(root, 3)
    params = init_params(k_params, vocab=VOCAB, hidden=HIDDEN, num_heads=HEADS,
                         head_dim=HEAD_DIM, intermediate=INTER, num_layers=LAYERS)

    input_ids = jax.random.randint(k_ids, (B, S), 0, VOCAB, dtype=jnp.int32)
    labels = jax.random.randint(k_labels, (B, S), 0, VOCAB, dtype=jnp.int32)

    logits = dipaco_llama_forward(input_ids, labels, params,
                                  num_heads=HEADS, head_dim=HEAD_DIM, train=True)
    jax.block_until_ready(logits)
    assert logits.shape == (B, S, VOCAB) and logits.dtype == jnp.float32
    assert bool(jnp.all(jnp.isfinite(logits)))
    print("KERNEL_OK")
</pallas_src>

<mosaic_0001>
module attributes {stable_mosaic.version = 11 : i64} {
  func.func @norm_linear_kernel(%arg0: i32, %arg1: i32, %arg2: memref<256x256xbf16, #tpu.memory_space<vmem>>, %arg3: memref<1x256xbf16, #tpu.memory_space<vmem>>, %arg4: memref<256x256xbf16, #tpu.memory_space<vmem>>, %arg5: memref<256x256xbf16, #tpu.memory_space<vmem>>, %arg6: memref<256x256xbf16, #tpu.memory_space<vmem>>) attributes {dimension_semantics = [#tpu.dimension_semantics<parallel>, #tpu.dimension_semantics<arbitrary>], iteration_bounds = array<i64: 2, 3>, scalar_prefetch = 0 : i64, scratch_operands = 1 : i64, tpu.core_type = #tpu.core_type<tc>, window_params = [{transform_indices = @transform_0, window_bounds = array<i64: 256, 256>}, {pipeline_mode = #tpu.pipeline_mode<synchronous>, transform_indices = @transform_1, window_bounds = array<i64: 1, 256>}, {transform_indices = @transform_2, window_bounds = array<i64: 256, 256>}, {transform_indices = @transform_3, window_bounds = array<i64: 256, 256>}]} {
    %c0_i32 = arith.constant 0 : i32
    %0 = arith.cmpi eq, %arg1, %c0_i32 : i32
    %1 = arith.extui %0 : i1 to i32
    %c0_i32_0 = arith.constant 0 : i32
    %2 = arith.cmpi ne, %1, %c0_i32_0 : i32
    scf.if %2 {
      %c0_6 = arith.constant 0 : index
      %c0_7 = arith.constant 0 : index
      %8 = vector.load %arg2[%c0_6, %c0_7] : memref<256x256xbf16, #tpu.memory_space<vmem>>, vector<256x256xbf16>
      %9 = arith.extf %8 : vector<256x256xbf16> to vector<256x256xf32>
      %10 = arith.mulf %9, %9 : vector<256x256xf32>
      %cst_8 = arith.constant dense<0.000000e+00> : vector<256xf32>
      %11 = vector.multi_reduction <add>, %10, %cst_8 [1] : vector<256x256xf32> to vector<256xf32>
      %12 = vector.shape_cast %11 : vector<256xf32> to vector<256x1xf32>
      %cst_9 = arith.constant 2.560000e+02 : f32
      %13 = vector.broadcast %cst_9 : f32 to vector<256x1xf32>
      %14 = arith.divf %12, %13 : vector<256x1xf32>
      %cst_10 = arith.constant 9.99999997E-7 : f32
      %15 = vector.broadcast %cst_10 : f32 to vector<256x1xf32>
      %16 = arith.addf %14, %15 : vector<256x1xf32>
      %17 = math.rsqrt %16 : vector<256x1xf32>
      %18 = vector.broadcast %17 : vector<256x1xf32> to vector<256x256xf32>
      %19 = arith.mulf %9, %18 : vector<256x256xf32>
      %20 = arith.truncf %19 : vector<256x256xf32> to vector<256x256xbf16>
      %c0_11 = arith.constant 0 : index
      %c0_12 = arith.constant 0 : index
      %21 = vector.load %arg3[%c0_11, %c0_12] : memref<1x256xbf16, #tpu.memory_space<vmem>>, vector<1x256xbf16>
      %22 = vector.broadcast %21 : vector<1x256xbf16> to vector<256x256xbf16>
      %23 = arith.mulf %20, %22 : vector<256x256xbf16>
      %c0_13 = arith.constant 0 : index
      %c0_14 = arith.constant 0 : index
      %24 = vector.load %arg6[%c0_13, %c0_14] : memref<256x256xbf16, #tpu.memory_space<vmem>>, vector<256x256xbf16>
      tpu.vector_store %arg6[%c0_13, %c0_14], %23 {strides = array<i32>} : memref<256x256xbf16, #tpu.memory_space<vmem>>, vector<256x256xbf16>,
    } else {
    }
    %c0 = arith.constant 0 : index
    %c0_1 = arith.constant 0 : index
    %3 = vector.load %arg6[%c0, %c0_1] : memref<256x256xbf16, #tpu.memory_space<vmem>>, vector<256x256xbf16>
    %c0_2 = arith.constant 0 : index
    %c0_3 = arith.constant 0 : index
    %4 = vector.load %arg4[%c0_2, %c0_3] : memref<256x256xbf16, #tpu.memory_space<vmem>>, vector<256x256xbf16>
    %cst = arith.constant dense<0.000000e+00> : vector<256x256xf32>
    %5 = tpu.matmul %3, %4, %cst {dimension_numbers = #tpu.dot_dimension_numbers<[1], [0], [0], [1], [0, 0, 1, 1], [], []>} : vector<256x256xbf16>, vector<256x256xbf16>, vector<256x256xf32> -> vector<256x256xf32>
    %6 = arith.truncf %5 : vector<256x256xf32> to vector<256x256xbf16>
    %c0_4 = arith.constant 0 : index
    %c0_5 = arith.constant 0 : index
    %7 = vector.load %arg5[%c0_4, %c0_5] : memref<256x256xbf16, #tpu.memory_space<vmem>>, vector<256x256xbf16>
    tpu.vector_store %arg5[%c0_4, %c0_5], %6 {strides = array<i32>} : memref<256x256xbf16, #tpu.memory_space<vmem>>, vector<256x256xbf16>,
    return
  }
  func.func @transform_0(%arg0: i32, %arg1: i32) -> (i32, i32) {
    %c0_i32 = arith.constant 0 : i32
    %c0_i32_0 = arith.constant 0 : i32
    return %arg0, %c0_i32 : i32, i32
  }
  func.func @transform_1(%arg0: i32, %arg1: i32) -> (i32, i32) {
    %c0_i32 = arith.constant 0 : i32
    %c0_i32_0 = arith.constant 0 : i32
    %c0_i32_1 = arith.constant 0 : i32
    return %c0_i32, %c0_i32_0 : i32, i32
  }
  func.func @transform_2(%arg0: i32, %arg1: i32) -> (i32, i32) {
    %c0_i32 = arith.constant 0 : i32
    %c0_i32_0 = arith.constant 0 : i32
    return %c0_i32, %arg1 : i32, i32
  }
  func.func @transform_3(%arg0: i32, %arg1: i32) -> (i32, i32) {
    %c0_i32 = arith.constant 0 : i32
    return %arg0, %arg1 : i32, i32
  }
}

</mosaic_0001>

<llo_original>
// kernel: tpu_custom_call.1
$region0: #{tpu_custom_call.1}
  #allocation0 [shape = 'u32[]', space=smem, size = 0x4, offset = 0x4, fixed_abs, tag = 'smem constant byte address 0x4 - core index']
  #allocation1 [shape = 'u32[144,128]{1,0:T(1,128)}', space=vmem, size = 0x12000, scoped, tag = 'internal scratch']
  #allocation2 [shape = 'bf16[256,256]{1,0:T(16,128)(2,1)}', space=vmem, size = 0x20000, scoped, tag = 'scratch operand']
  %s0 = inlined_call_operand.hbm [shape: bf16[512,256], index: 0, kind: input, shape index: {}]
  %s1 = inlined_call_operand.hbm [shape: bf16[1,256], index: 1, kind: input, shape index: {}]
  %s2 = inlined_call_operand.hbm [shape: bf16[256,768], index: 2, kind: input, shape index: {}]
  %s3 = inlined_call_operand.hbm [shape: bf16[512,768], index: 3, kind: output, shape index: {}]
  %s4 = sld [smem:[#allocation0]]
  $region61: #{tpu_custom_call.1} parent=0
    _
  %s6 = ssub.s32 1, %s4
  %s7 = scalar_select 0, %s6, %s4
  $region1: #{tpu_custom_call.1} parent=0
    #allocation3 [shape = 'u8[262144]{0}', space=vmem, size = 0x40000, scoped, tag = 'input window, operand 0']
    #allocation4 [shape = 's32[2]{0}', space=sflag, size = 0x8, scoped, tag = 'scoped memory for tpu_custom_call.1']
    #allocation5 [shape = 's32[2]{0}', space=sflag, size = 0x8, scoped, tag = 'scoped memory for tpu_custom_call.1']
    #allocation6 [shape = 'u8[1024]{0}', space=vmem, size = 0x400, scoped, tag = 'input window, operand 1, single buffered']
    #allocation7 [shape = 's32[1]{0}', space=sflag, size = 0x4, scoped, tag = 'scoped memory for tpu_custom_call.1']
    #allocation8 [shape = 'u8[262144]{0}', space=vmem, size = 0x40000, scoped, tag = 'input window, operand 2']
    #allocation9 [shape = 'u8[262144]{0}', space=vmem, size = 0x40000, scoped, tag = 'output window, operand 0']
    %8 = vsyncpa [#allocation4], 0
    %s9 = scalar_lea.sflag [#allocation4], 1
    %10 = vsyncpa %s9, 0
    %11 = vsyncpa [#allocation7], 0
    %12 = vsyncpa [#allocation5], 0
    %s13 = scalar_lea.sflag [#allocation5], 1
    %14 = vsyncpa %s13, 0
    loop: start=0, step=1, limit=8
    $region2: #{tpu_custom_call.1} parent=1 // loop_pre_header
      _
    $region3: #{tpu_custom_call.1} parent=1 // loop_header
      %s16 = sphi 0, %s20
      %p17 = scmp.ge.s32.totalorder %s16, 8
      %s23 = sphi 0, %s35
      %s24 = sphi 0, %s31
      %s25 = sphi 0, %s23
      %s26 = sphi 0, %s24
      %s27 = sphi 0, %s25
      %s28 = sphi 0, %s26
      %s38 = sphi 0, %s40
      %s41 = sphi 0, %s38
      %s42 = sphi 0, %s41
      %s58 = sphi 0, %s42
      %s62 = sphi 0, %s62
      %s64 = sphi 0, %s62
      %s65 = sphi 0, %s64
      %s79 = sphi 0, %s65
      %s85 = sphi 0, %s87
      %s88 = sphi 0, %s85
      %s89 = sphi 0, %s88
      %s105 = sphi 0, %s89
      %s113 = sphi 0, %s115
      %s116 = sphi 0, %s113
      %s117 = sphi 0, %s116
      %s133 = sphi 0, %s117
    $region4: #{tpu_custom_call.1} parent=1 // loop_header_branch
      %19 = sbr.rel (%p17) target = $region8
    $region5: #{tpu_custom_call.1} parent=1 // loop_body
      %s21 = ssub.s32 %s16, 1
      %s22 = ssub.s32 %s16, 2
      %s29 = sadd.s32 1, %s24
      %p30 = scmp.ge.s32.totalorder %s29, 3
      %s31 = scalar_select %p30, 0, %s29
      %s32 = sadd.s32 1, %s23
      %s33 = scalar_select %p30, %s32, %s23
      %p34 = scmp.ge.s32.totalorder %s33, 2
      %s35 = scalar_select %p34, 0, %s33
      %s36 = ssub.s32 %s23, %s35
      %p37 = scmp.eq.s32.totalorder %s36, 0
      %s39 = sadd.s32 %s38, 1
      %s40 = scalar_select %p37, %s38, %s39
      %p43 = pneg %p37
      %p44 = scmp.eq.s32.totalorder %s16, 5
      %p45 = por %p43, %p44
      %p46 = scmp.ne.s32.totalorder %s38, %s41
      %p47 = scmp.eq.s32.totalorder %s16, 0
      %p48 = por %p46, %p47
      %p49 = scmp.ne.s32.totalorder %s38, %s41
      %p50 = scmp.eq.s32.totalorder %s21, 5
      %p51 = por %p49, %p50
      %p52 = scmp.ne.s32.totalorder %s41, %s42
      %p53 = scmp.eq.s32.totalorder %s21, 0
      %p54 = por %p52, %p53
      %p55 = scmp.ne.s32.totalorder %s41, %s42
      %p56 = scmp.eq.s32.totalorder %s22, 5
      %p57 = por %p55, %p56
      %p59 = scmp.ne.s32.totalorder %s42, %s58
      %p60 = scmp.eq.s32.totalorder %s22, 0
      %p61 = por %p59, %p60
      %s63 = sadd.s32 %s62, 1
      %p66 = scmp.eq.s32.totalorder %s16, 5
      %p67 = scmp.ne.s32.totalorder %s62, %s64
      %p68 = scmp.eq.s32.totalorder %s16, 0
      %p69 = por %p67, %p68
      %p70 = scmp.ne.s32.totalorder %s62, %s64
      %p71 = scmp.eq.s32.totalorder %s21, 5
      %p72 = por %p70, %p71
      %p73 = scmp.ne.s32.totalorder %s64, %s65
      %p74 = scmp.eq.s32.totalorder %s21, 0
      %p75 = por %p73, %p74
      %p76 = scmp.ne.s32.totalorder %s64, %s65
      %p77 = scmp.eq.s32.totalorder %s22, 5
      %p78 = por %p76, %p77
      %p80 = scmp.ne.s32.totalorder %s65, %s79
      %p81 = scmp.eq.s32.totalorder %s22, 0
      %p82 = por %p80, %p81
      %s83 = ssub.s32 %s24, %s31
      %p84 = scmp.eq.s32.totalorder %s83, 0
      %s86 = sadd.s32 %s85, 1
      %s87 = scalar_select %p84, %s85, %s86
      %p90 = pneg %p84
      %p91 = scmp.eq.s32.totalorder %s16, 5
      %p92 = por %p90, %p91
      %p93 = scmp.ne.s32.totalorder %s85, %s88
      %p94 = scmp.eq.s32.totalorder %s16, 0
      %p95 = por %p93, %p94
      %p96 = scmp.ne.s32.totalorder %s85, %s88
      %p97 = scmp.eq.s32.totalorder %s21, 5
      %p98 = por %p96, %p97
      %p99 = scmp.ne.s32.totalorder %s88, %s89
      %p100 = scmp.eq.s32.totalorder %s21, 0
      %p101 = por %p99, %p100
      %p102 = scmp.ne.s32.totalorder %s88, %s89
      %p103 = scmp.eq.s32.totalorder %s22, 5
      %p104 = por %p102, %p103
      %p106 = scmp.ne.s32.totalorder %s89, %s105
      %p107 = scmp.eq.s32.totalorder %s22, 0
      %p108 = por %p106, %p107
      %s109 = ssub.s32 %s23, %s35
      %s110 = ssub.s32 %s24, %s31
      %s111 = sor.u32 %s109, %s110
      %p112 = scmp.eq.s32.totalorder %s111, 0
      %s114 = sadd.s32 %s113, 1
      %s115 = scalar_select %p112, %s113, %s114
      %p118 = pneg %p112
      %p119 = scmp.eq.s32.totalorder %s16, 5
      %p120 = por %p118, %p119
      %p121 = scmp.ne.s32.totalorder %s113, %s116
      %p122 = scmp.eq.s32.totalorder %s16, 0
      %p123 = por %p121, %p122
      %p124 = scmp.ne.s32.totalorder %s113, %s116
      %p125 = scmp.eq.s32.totalorder %s21, 5
      %p126 = por %p124, %p125
      %p127 = scmp.ne.s32.totalorder %s116, %s117
      %p128 = scmp.eq.s32.totalorder %s21, 0
      %p129 = por %p127, %p128
      %p130 = scmp.ne.s32.totalorder %s116, %s117
      %p131 = scmp.eq.s32.totalorder %s22, 5
      %p132 = por %p130, %p131
      %p134 = scmp.ne.s32.totalorder %s117, %s133
      %p135 = scmp.eq.s32.totalorder %s22, 0
      %p136 = por %p134, %p135
      %p137 = scmp.le.s32.totalorder 1, %s16
      %p138 = scmp.lt.s32.totalorder %s16, 7
      %p139 = pnand %p137, %p138
      %p140 = pneg %p139
      // Predicated region
      $region9: #{tpu_custom_call.1} parent=5 // pred_check
        _
      $region10: #{tpu_custom_call.1} parent=5 // pred_check_branch
        %142 = sbr.rel (%p139) target = $region12
      $region11: #{tpu_custom_call.1} parent=5 // pred_region
        %s143 = ssub.s32 %s16, 1
        // Predicated region
        $region13: #{tpu_custom_call.1} parent=11 // pred_check
          %p144 = pneg %p75
        $region14: #{tpu_custom_call.1} parent=11 // pred_check_branch
          %146 = sbr.rel (%p144) target = $region16
        $region15: #{tpu_custom_call.1} parent=11 // pred_region
          %s148 = ssub.s32 32, 32
          %149 = vsyncadd [#allocation7], %s148
          %s151 = sshll.u32 [#allocation6], 4
          %s152 = int_to_ptr.vmem [resolvable:$true] %s151
          %154 = dma.hbm_to_vmem [thread:$0]  %s1, 32, %s152, [#allocation7]
        $region16: #{tpu_custom_call.1} parent=11 // pred_fallthru
          _
      $region12: #{tpu_custom_call.1} parent=5 // pred_fallthru
        _
      %p155 = scmp.lt.s32.totalorder %s16, 6
      // Predicated region
      $region17: #{tpu_custom_call.1} parent=5 // pred_check
        %p156 = pneg %p155
      $region18: #{tpu_custom_call.1} parent=5 // pred_check_branch
        %158 = sbr.rel (%p156) target = $region20
      $region19: #{tpu_custom_call.1} parent=5 // pred_region
        // Predicated region
        $region21: #{tpu_custom_call.1} parent=19 // pred_check
          %p159 = pneg %p48
        $region22: #{tpu_custom_call.1} parent=19 // pred_check_branch
          %161 = sbr.rel (%p159) target = $region24
        $region23: #{tpu_custom_call.1} parent=19 // pred_region
          %s162 = sand.u32 %s16, 1
          %s163 = scalar_lea.sflag [#allocation4], %s162
          %s164 = sand.u32 %s38, 1
          %s165 = smul.addr %s164, 256
          %s166 = scalar_lea.vmem [#allocation3], %s165
          %s167 = smul.u32 32, %s23
          %s169 = ssub.s32 4096, 4096
          %170 = vsyncadd %s163, %s169
          %s171 = smul.addr %s167, 2
          %s172 = smul.addr %s171, 64
          %s173 = scalar_lea.hbm %s0, %s172
          %s174 = sshll.u32 %s166, 4
          %s175 = int_to_ptr.vmem [resolvable:$true] %s174
          %180 = dma.hbm_to_vmem [thread:$0]  %s173, 4096, %s175, %s163, 128, 128, 8
        $region24: #{tpu_custom_call.1} parent=19 // pred_fallthru
          _
        // Predicated region
        $region25: #{tpu_custom_call.1} parent=19 // pred_check
          %p181 = pneg %p95
        $region26: #{tpu_custom_call.1} parent=19 // pred_check_branch
          %183 = sbr.rel (%p181) target = $region28
        $region27: #{tpu_custom_call.1} parent=19 // pred_region
          %s184 = sand.u32 %s16, 1
          %s185 = scalar_lea.sflag [#allocation4], %s184
          %s186 = sand.u32 %s85, 1
          %s187 = smul.addr %s186, 256
          %s188 = scalar_lea.vmem [#allocation8], %s187
          %s189 = smul.u32 2, %s24
          %s191 = ssub.s32 4096, 4096
          %192 = vsyncadd %s185, %s191
          %s193 = smul.addr %s189, 64
          %s194 = scalar_lea.hbm %s2, %s193
          %s195 = sshll.u32 %s188, 4
          %s196 = int_to_ptr.vmem [resolvable:$true] %s195
          %201 = dma.hbm_to_vmem [thread:$0]  %s194, 4096, %s196, %s185, 384, 128, 8
        $region28: #{tpu_custom_call.1} parent=19 // pred_fallthru
          _
      $region20: #{tpu_custom_call.1} parent=5 // pred_fallthru
        _
      %p202 = scmp.le.s32.totalorder 1, %s16
      %p203 = scmp.lt.s32.totalorder %s16, 7
      %p204 = pnand %p202, %p203
      %p205 = pneg %p204
      // Predicated region
      $region29: #{tpu_custom_call.1} parent=5 // pred_check
        _
      $region30: #{tpu_custom_call.1} parent=5 // pred_check_branch
        %207 = sbr.rel (%p204) target = $region32
      $region31: #{tpu_custom_call.1} parent=5 // pred_region
        %s208 = ssub.s32 %s16, 1
        %s209 = sand.u32 %s21, 1
        %s210 = scalar_lea.sflag [#allocation4], %s209
        %s211 = sand.u32 %s41, 1
        %s212 = smul.addr %s211, 256
        %s213 = scalar_lea.vmem [#allocation3], %s212
        // Predicated region
        $region33: #{tpu_custom_call.1} parent=31 // pred_check
          %p214 = pneg %p54
        $region34: #{tpu_custom_call.1} parent=31 // pred_check_branch
          %216 = sbr.rel (%p214) target = $region36
        $region35: #{tpu_custom_call.1} parent=31 // pred_region
          %217 = dma.done %s210, 4096
        $region36: #{tpu_custom_call.1} parent=31 // pred_fallthru
          _
        // Predicated region
        $region37: #{tpu_custom_call.1} parent=31 // pred_check
          %p218 = pneg %p75
        $region38: #{tpu_custom_call.1} parent=31 // pred_check_branch
          %220 = sbr.rel (%p218) target = $region40
        $region39: #{tpu_custom_call.1} parent=31 // pred_region
          %221 = dma.done [#allocation7], 32
        $region40: #{tpu_custom_call.1} parent=31 // pred_fallthru
          _
        %s222 = sand.u32 %s21, 1
        %s223 = scalar_lea.sflag [#allocation4], %s222
        %s224 = sand.u32 %s88, 1
        %s225 = smul.addr %s224, 256
        %s226 = scalar_lea.vmem [#allocation8], %s225
        // Predicated region
        $region41: #{tpu_custom_call.1} parent=31 // pred_check
          %p227 = pneg %p101
        $region42: #{tpu_custom_call.1} parent=31 // pred_check_branch
          %229 = sbr.rel (%p227) target = $region44
        $region43: #{tpu_custom_call.1} parent=31 // pred_region
          %230 = dma.done %s223, 4096
        $region44: #{tpu_custom_call.1} parent=31 // pred_fallthru
          _
        %s231 = sand.u32 %s21, 1
        %s232 = scalar_lea.sflag [#allocation4], %s231
        %s233 = sand.u32 %s41, 1
        %s234 = smul.addr %s233, 256
        %s235 = scalar_lea.vmem [#allocation3], %s234
        %p236 = pneg %p54
        %p237 = pneg %p51
        %p238 = pneg %p75
        %p239 = pneg %p72
        %s240 = sand.u32 %s21, 1
        %s241 = scalar_lea.sflag [#allocation4], %s240
        %s242 = sand.u32 %s88, 1
        %s243 = smul.addr %s242, 256
        %s244 = scalar_lea.vmem [#allocation8], %s243
        %p245 = pneg %p101
        %p246 = pneg %p98
        %p247 = pneg %p129
        %p248 = pneg %p126
        %s249 = sand.u32 %s116, 1
        %s250 = scalar_lea.sflag [#allocation5], %s249
        %s251 = sand.u32 %s116, 1
        %s252 = smul.addr %s251, 256
        %s253 = scalar_lea.vmem [#allocation9], %s252
        %s254 = smul.u32 32, %s25
        %s255 = smul.u32 2, %s26
        %s256 = smul.u32 32, %s25
        %s257 = smul.u32 2, %s26
        %p258 = scmp.eq.s32.totalorder %s26, 0
        // Predicated region
        $region45: #{tpu_custom_call.1} parent=31 // pred_check
          %p259 = pneg %p258
        $region46: #{tpu_custom_call.1} parent=31 // pred_check_branch
          %261 = sbr.rel (%p259) target = $region48
        $region47: #{tpu_custom_call.1} parent=31 // pred_region
          %v262 = vld [vmem:[%s213] sm:$0xff]
          %v263 = vld [vmem:[%s213 + $0x8] sm:$0xff]
          %v264 = vld [vmem:[%s213 + $0x10] sm:$0xff]
          %v265 = vld [vmem:[%s213 + $0x18] sm:$0xff]
          %v266 = vld [vmem:[%s213 + $0x20] sm:$0xff]
          %v267 = vld [vmem:[%s213 + $0x28] sm:$0xff]
          %v268 = vld [vmem:[%s213 + $0x30] sm:$0xff]
          %v269 = vld [vmem:[%s213 + $0x38] sm:$0xff]
          %v270 = vld [vmem:[%s213 + $0x40] sm:$0xff]
          %v271 = vld [vmem:[%s213 + $0x48] sm:$0xff]
          %v272 = vld [vmem:[%s213 + $0x50] sm:$0xff]
          %v273 = vld [vmem:[%s213 + $0x58] sm:$0xff]
          %v274 = vld [vmem:[%s213 + $0x60] sm:$0xff]
          %v275 = vld [vmem:[%s213 + $0x68] sm:$0xff]
          %v276 = vld [vmem:[%s213 + $0x70] sm:$0xff]
          %v277 = vld [vmem:[%s213 + $0x78] sm:$0xff]
          %v278 = vld [vmem:[%s213 + $0x80] sm:$0xff]
          %v279 = vld [vmem:[%s213 + $0x88] sm:$0xff]
          %v280 = vld [vmem:[%s213 + $0x90] sm:$0xff]
          %v281 = vld [vmem:[%s213 + $0x98] sm:$0xff]
          %v282 = vld [vmem:[%s213 + $0xa0] sm:$0xff]
          %v283 = vld [vmem:[%s213 + $0xa8] sm:$0xff]
          %v284 = vld [vmem:[%s213 + $0xb0] sm:$0xff]
          %v285 = vld [vmem:[%s213 + $0xb8] sm:$0xff]
          %v286 = vld [vmem:[%s213 + $0xc0] sm:$0xff]
          %v287 = vld [vmem:[%s213 + $0xc8] sm:$0xff]
          %v288 = vld [vmem:[%s213 + $0xd0] sm:$0xff]
          %v289 = vld [vmem:[%s213 + $0xd8] sm:$0xff]
          %v290 = vld [vmem:[%s213 + $0xe0] sm:$0xff]
          %v291 = vld [vmem:[%s213 + $0xe8] sm:$0xff]
          %v292 = vld [vmem:[%s213 + $0xf0] sm:$0xff]
          %v293 = vld [vmem:[%s213 + $0xf8] sm:$0xff]
          %v294 = vunpack.c.l.bf16 %v262
          %v295 = vunpack.c.h.bf16 %v262
          %v296 = vunpack.c.l.bf16 %v263
          %v297 = vunpack.c.h.bf16 %v263
          %v298 = vunpack.c.l.bf16 %v264
          %v299 = vunpack.c.h.bf16 %v264
          %v300 = vunpack.c.l.bf16 %v265
          %v301 = vunpack.c.h.bf16 %v265
          %v302 = vunpack.c.l.bf16 %v266
          %v303 = vunpack.c.h.bf16 %v266
          %v304 = vunpack.c.l.bf16 %v267
          %v305 = vunpack.c.h.bf16 %v267
          %v306 = vunpack.c.l.bf16 %v268
          %v307 = vunpack.c.h.bf16 %v268
          %v308 = vunpack.c.l.bf16 %v269
          %v309 = vunpack.c.h.bf16 %v269
          %v310 = vunpack.c.l.bf16 %v270
          %v311 = vunpack.c.h.bf16 %v270
          %v312 = vunpack.c.l.bf16 %v271
          %v313 = vunpack.c.h.bf16 %v271
          %v314 = vunpack.c.l.bf16 %v272
          %v315 = vunpack.c.h.bf16 %v272
          %v316 = vunpack.c.l.bf16 %v273
          %v317 = vunpack.c.h.bf16 %v273
          %v318 = vunpack.c.l.bf16 %v274
          %v319 = vunpack.c.h.bf16 %v274
          %v320 = vunpack.c.l.bf16 %v275
          %v321 = vunpack.c.h.bf16 %v275
          %v322 = vunpack.c.l.bf16 %v276
          %v323 = vunpack.c.h.bf16 %v276
          %v324 = vunpack.c.l.bf16 %v277
          %v325 = vunpack.c.h.bf16 %v277
          %v326 = vunpack.c.l.bf16 %v278
          %v327 = vunpack.c.h.bf16 %v278
          %v328 = vunpack.c.l.bf16 %v279
          %v329 = vunpack.c.h.bf16 %v279
          %v330 = vunpack.c.l.bf16 %v280
          %v331 = vunpack.c.h.bf16 %v280
          %v332 = vunpack.c.l.bf16 %v281
          %v333 = vunpack.c.h.bf16 %v281
          %v334 = vunpack.c.l.bf16 %v282
          %v335 = vunpack.c.h.bf16 %v282
          %v336 = vunpack.c.l.bf16 %v283
          %v337 = vunpack.c.h.bf16 %v283
          %v338 = vunpack.c.l.bf16 %v284
          %v339 = vunpack.c.h.bf16 %v284
          %v340 = vunpack.c.l.bf16 %v285
          %v341 = vunpack.c.h.bf16 %v285
          %v342 = vunpack.c.l.bf16 %v286
          %v343 = vunpack.c.h.bf16 %v286
          %v344 = vunpack.c.l.bf16 %v287
          %v345 = vunpack.c.h.bf16 %v287
          %v346 = vunpack.c.l.bf16 %v288
          %v347 = vunpack.c.h.bf16 %v288
          %v348 = vunpack.c.l.bf16 %v289
          %v349 = vunpack.c.h.bf16 %v289
          %v350 = vunpack.c.l.bf16 %v290
          %v351 = vunpack.c.h.bf16 %v290
          %v352 = vunpack.c.l.bf16 %v291
          %v353 = vunpack.c.h.bf16 %v291
          %v354 = vunpack.c.l.bf16 %v292
          %v355 = vunpack.c.h.bf16 %v292
          %v356 = vunpack.c.l.bf16 %v293
          %v357 = vunpack.c.h.bf16 %v293
          %v358 = vmul.f32 %v294, %v294
          %v359 = vmul.f32 %v295, %v295
          %v360 = vmul.f32 %v296, %v296
          %v361 = vmul.f32 %v297, %v297
          %v362 = vmul.f32 %v298, %v298
          %v363 = vmul.f32 %v299, %v299
          %v364 = vmul.f32 %v300, %v300
          %v365 = vmul.f32 %v301, %v301
          %v366 = vmul.f32 %v302, %v302
          %v367 = vmul.f32 %v303, %v303
          %v368 = vmul.f32 %v304, %v304
          %v369 = vmul.f32 %v305, %v305
          %v370 = vmul.f32 %v306, %v306
          %v371 = vmul.f32 %v307, %v307
          %v372 = vmul.f32 %v308, %v308
          %v373 = vmul.f32 %v309, %v309
          %v374 = vmul.f32 %v310, %v310
          %v375 = vmul.f32 %v311, %v311
          %v376 = vmul.f32 %v312, %v312
          %v377 = vmul.f32 %v313, %v313
          %v378 = vmul.f32 %v314, %v314
          %v379 = vmul.f32 %v315, %v315
          %v380 = vmul.f32 %v316, %v316
          %v381 = vmul.f32 %v317, %v317
          %v382 = vmul.f32 %v318, %v318
          %v383 = vmul.f32 %v319, %v319
          %v384 = vmul.f32 %v320, %v320
          %v385 = vmul.f32 %v321, %v321
          %v386 = vmul.f32 %v322, %v322
          %v387 = vmul.f32 %v323, %v323
          %v388 = vmul.f32 %v324, %v324
          %v389 = vmul.f32 %v325, %v325
          %v390 = vmul.f32 %v326, %v326
          %v391 = vmul.f32 %v327, %v327
          %v392 = vmul.f32 %v328, %v328
          %v393 = vmul.f32 %v329, %v329
          %v394 = vmul.f32 %v330, %v330
          %v395 = vmul.f32 %v331, %v331
          %v396 = vmul.f32 %v332, %v332
          %v397 = vmul.f32 %v333, %v333
          %v398 = vmul.f32 %v334, %v334
          %v399 = vmul.f32 %v335, %v335
          %v400 = vmul.f32 %v336, %v336
          %v401 = vmul.f32 %v337, %v337
          %v402 = vmul.f32 %v338, %v338
          %v403 = vmul.f32 %v339, %v339
          %v404 = vmul.f32 %v340, %v340
          %v405 = vmul.f32 %v341, %v341
          %v406 = vmul.f32 %v342, %v342
          %v407 = vmul.f32 %v343, %v343
          %v408 = vmul.f32 %v344, %v344
          %v409 = vmul.f32 %v345, %v345
          %v410 = vmul.f32 %v346, %v346
          %v411 = vmul.f32 %v347, %v347
          %v412 = vmul.f32 %v348, %v348
          %v413 = vmul.f32 %v349, %v349
          %v414 = vmul.f32 %v350, %v350
          %v415 = vmul.f32 %v351, %v351
          %v416 = vmul.f32 %v352, %v352
          %v417 = vmul.f32 %v353, %v353
          %v418 = vmul.f32 %v354, %v354
          %v419 = vmul.f32 %v355, %v355
          %v420 = vmul.f32 %v356, %v356
          %v421 = vmul.f32 %v357, %v357
          %v422 = vadd.f32 %v358, %v359
          %423 = vadd.xlane.f32.xlu0 %v422
          %v424 = vpop.xlane.xlu0 %423
          %v425 = vadd.f32 %v360, %v361
          %426 = vadd.xlane.f32.xlu0 %v425
          %v427 = vpop.xlane.xlu0 %426
          %v428 = vadd.f32 %v362, %v363
          %429 = vadd.xlane.f32.xlu0 %v428
          %v430 = vpop.xlane.xlu0 %429
          %v431 = vadd.f32 %v364, %v365
          %432 = vadd.xlane.f32.xlu0 %v431
          %v433 = vpop.xlane.xlu0 %432
          %v434 = vadd.f32 %v366, %v367
          %435 = vadd.xlane.f32.xlu0 %v434
          %v436 = vpop.xlane.xlu0 %435
          %v437 = vadd.f32 %v368, %v369
          %438 = vadd.xlane.f32.xlu0 %v437
          %v439 = vpop.xlane.xlu0 %438
          %v440 = vadd.f32 %v370, %v371
          %441 = vadd.xlane.f32.xlu0 %v440
          %v442 = vpop.xlane.xlu0 %441
          %v443 = vadd.f32 %v372, %v373
          %444 = vadd.xlane.f32.xlu0 %v443
          %v445 = vpop.xlane.xlu0 %444
          %v446 = vadd.f32 %v374, %v375
          %447 = vadd.xlane.f32.xlu0 %v446
          %v448 = vpop.xlane.xlu0 %447
          %v449 = vadd.f32 %v376, %v377
          %450 = vadd.xlane.f32.xlu0 %v449
          %v451 = vpop.xlane.xlu0 %450
          %v452 = vadd.f32 %v378, %v379
          %453 = vadd.xlane.f32.xlu0 %v452
          %v454 = vpop.xlane.xlu0 %453
          %v455 = vadd.f32 %v380, %v381
          %456 = vadd.xlane.f32.xlu0 %v455
          %v457 = vpop.xlane.xlu0 %456
          %v458 = vadd.f32 %v382, %v383
          %459 = vadd.xlane.f32.xlu0 %v458
          %v460 = vpop.xlane.xlu0 %459
          %v461 = vadd.f32 %v384, %v385
          %462 = vadd.xlane.f32.xlu0 %v461
          %v463 = vpop.xlane.xlu0 %462
          %v464 = vadd.f32 %v386, %v387
          %465 = vadd.xlane.f32.xlu0 %v464
          %v466 = vpop.xlane.xlu0 %465
          %v467 = vadd.f32 %v388, %v389
          %468 = vadd.xlane.f32.xlu0 %v467
          %v469 = vpop.xlane.xlu0 %468
          %v470 = vadd.f32 %v390, %v391
          %471 = vadd.xlane.f32.xlu0 %v470
          %v472 = vpop.xlane.xlu0 %471
          %v473 = vadd.f32 %v392, %v393
          %474 = vadd.xlane.f32.xlu0 %v473
          %v475 = vpop.xlane.xlu0 %474
          %v476 = vadd.f32 %v394, %v395
          %477 = vadd.xlane.f32.xlu0 %v476
          %v478 = vpop.xlane.xlu0 %477
          %v479 = vadd.f32 %v396, %v397
          %480 = vadd.xlane.f32.xlu0 %v479
          %v481 = vpop.xlane.xlu0 %480
          %v482 = vadd.f32 %v398, %v399
          %483 = vadd.xlane.f32.xlu0 %v482
          %v484 = vpop.xlane.xlu0 %483
          %v485 = vadd.f32 %v400, %v401
          %486 = vadd.xlane.f32.xlu0 %v485
          %v487 = vpop.xlane.xlu0 %486
          %v488 = vadd.f32 %v402, %v403
          %489 = vadd.xlane.f32.xlu0 %v488
          %v490 = vpop.xlane.xlu0 %489
          %v491 = vadd.f32 %v404, %v405
          %492 = vadd.xlane.f32.xlu0 %v491
          %v493 = vpop.xlane.xlu0 %492
          %v494 = vadd.f32 %v406, %v407
          %495 = vadd.xlane.f32.xlu0 %v494
          %v496 = vpop.xlane.xlu0 %495
          %v497 = vadd.f32 %v408, %v409
          %498 = vadd.xlane.f32.xlu0 %v497
          %v499 = vpop.xlane.xlu0 %498
          %v500 = vadd.f32 %v410, %v411
          %501 = vadd.xlane.f32.xlu0 %v500
          %v502 = vpop.xlane.xlu0 %501
          %v503 = vadd.f32 %v412, %v413
          %504 = vadd.xlane.f32.xlu0 %v503
          %v505 = vpop.xlane.xlu0 %504
          %v506 = vadd.f32 %v414, %v415
          %507 = vadd.xlane.f32.xlu0 %v506
          %v508 = vpop.xlane.xlu0 %507
          %v509 = vadd.f32 %v416, %v417
          %510 = vadd.xlane.f32.xlu0 %v509
          %v511 = vpop.xlane.xlu0 %510
          %v512 = vadd.f32 %v418, %v419
          %513 = vadd.xlane.f32.xlu0 %v512
          %v514 = vpop.xlane.xlu0 %513
          %v515 = vadd.f32 %v420, %v421
          %516 = vadd.xlane.f32.xlu0 %v515
          %v517 = vpop.xlane.xlu0 %516
          %v518 = vrcp.pop 256.0
          %v519 = vmul.f32 %v424, %v518
          %v520 = vmul.f32 %v427, %v518
          %v521 = vmul.f32 %v430, %v518
          %v522 = vmul.f32 %v433, %v518
          %v523 = vmul.f32 %v436, %v518
          %v524 = vmul.f32 %v439, %v518
          %v525 = vmul.f32 %v442, %v518
          %v526 = vmul.f32 %v445, %v518
          %v527 = vmul.f32 %v448, %v518
          %v528 = vmul.f32 %v451, %v518
          %v529 = vmul.f32 %v454, %v518
          %v530 = vmul.f32 %v457, %v518
          %v531 = vmul.f32 %v460, %v518
          %v532 = vmul.f32 %v463, %v518
          %v533 = vmul.f32 %v466, %v518
          %v534 = vmul.f32 %v469, %v518
          %v535 = vmul.f32 %v472, %v518
          %v536 = vmul.f32 %v475, %v518
          %v537 = vmul.f32 %v478, %v518
          %v538 = vmul.f32 %v481, %v518
          %v539 = vmul.f32 %v484, %v518
          %v540 = vmul.f32 %v487, %v518
          %v541 = vmul.f32 %v490, %v518
          %v542 = vmul.f32 %v493, %v518
          %v543 = vmul.f32 %v496, %v518
          %v544 = vmul.f32 %v499, %v518
          %v545 = vmul.f32 %v502, %v518
          %v546 = vmul.f32 %v505, %v518
          %v547 = vmul.f32 %v508, %v518
          %v548 = vmul.f32 %v511, %v518
          %v549 = vmul.f32 %v514, %v518
          %v550 = vmul.f32 %v517, %v518
          %v551 = vadd.f32 %v519, 1e-06
          %v552 = vadd.f32 %v520, 1e-06
          %v553 = vadd.f32 %v521, 1e-06
          %v554 = vadd.f32 %v522, 1e-06
          %v555 = vadd.f32 %v523, 1e-06
          %v556 = vadd.f32 %v524, 1e-06
          %v557 = vadd.f32 %v525, 1e-06
          %v558 = vadd.f32 %v526, 1e-06
          %v559 = vadd.f32 %v527, 1e-06
          %v560 = vadd.f32 %v528, 1e-06
          %v561 = vadd.f32 %v529, 1e-06
          %v562 = vadd.f32 %v530, 1e-06
          %v563 = vadd.f32 %v531, 1e-06
          %v564 = vadd.f32 %v532, 1e-06
          %v565 = vadd.f32 %v533, 1e-06
          %v566 = vadd.f32 %v534, 1e-06
          %v567 = vadd.f32 %v535, 1e-06
          %v568 = vadd.f32 %v536, 1e-06
          %v569 = vadd.f32 %v537, 1e-06
          %v570 = vadd.f32 %v538, 1e-06
          %v571 = vadd.f32 %v539, 1e-06
          %v572 = vadd.f32 %v540, 1e-06
          %v573 = vadd.f32 %v541, 1e-06
          %v574 = vadd.f32 %v542, 1e-06
          %v575 = vadd.f32 %v543, 1e-06
          %v576 = vadd.f32 %v544, 1e-06
          %v577 = vadd.f32 %v545, 1e-06
          %v578 = vadd.f32 %v546, 1e-06
          %v579 = vadd.f32 %v547, 1e-06
          %v580 = vadd.f32 %v548, 1e-06
          %v581 = vadd.f32 %v549, 1e-06
          %v582 = vadd.f32 %v550, 1e-06
          %v583 = vrsqrt.pop %v551
          %v584 = vrsqrt.pop %v552
          %v585 = vrsqrt.pop %v553
          %v586 = vrsqrt.pop %v554
          %v587 = vrsqrt.pop %v555
          %v588 = vrsqrt.pop %v556
          %v589 = vrsqrt.pop %v557
          %v590 = vrsqrt.pop %v558
          %v591 = vrsqrt.pop %v559
          %v592 = vrsqrt.pop %v560
          %v593 = vrsqrt.pop %v561
          %v594 = vrsqrt.pop %v562
          %v595 = vrsqrt.pop %v563
          %v596 = vrsqrt.pop %v564
          %v597 = vrsqrt.pop %v565
          %v598 = vrsqrt.pop %v566
          %v599 = vrsqrt.pop %v567
          %v600 = vrsqrt.pop %v568
          %v601 = vrsqrt.pop %v569
          %v602 = vrsqrt.pop %v570
          %v603 = vrsqrt.pop %v571
          %v604 = vrsqrt.pop %v572
          %v605 = vrsqrt.pop %v573
          %v606 = vrsqrt.pop %v574
          %v607 = vrsqrt.pop %v575
          %v608 = vrsqrt.pop %v576
          %v609 = vrsqrt.pop %v577
          %v610 = vrsqrt.pop %v578
          %v611 = vrsqrt.pop %v579
          %v612 = vrsqrt.pop %v580
          %v613 = vrsqrt.pop %v581
          %v614 = vrsqrt.pop %v582
          %v615 = vmul.f32 %v294, %v583
          %v616 = vmul.f32 %v295, %v583
          %v617 = vmul.f32 %v296, %v584
          %v618 = vmul.f32 %v297, %v584
          %v619 = vmul.f32 %v298, %v585
          %v620 = vmul.f32 %v299, %v585
          %v621 = vmul.f32 %v300, %v586
          %v622 = vmul.f32 %v301, %v586
          %v623 = vmul.f32 %v302, %v587
          %v624 = vmul.f32 %v303, %v587
          %v625 = vmul.f32 %v304, %v588
          %v626 = vmul.f32 %v305, %v588
          %v627 = vmul.f32 %v306, %v589
          %v628 = vmul.f32 %v307, %v589
          %v629 = vmul.f32 %v308, %v590
          %v630 = vmul.f32 %v309, %v590
          %v631 = vmul.f32 %v310, %v591
          %v632 = vmul.f32 %v311, %v591
          %v633 = vmul.f32 %v312, %v592
          %v634 = vmul.f32 %v313, %v592
          %v635 = vmul.f32 %v314, %v593
          %v636 = vmul.f32 %v315, %v593
          %v637 = vmul.f32 %v316, %v594
          %v638 = vmul.f32 %v317, %v594
          %v639 = vmul.f32 %v318, %v595
          %v640 = vmul.f32 %v319, %v595
          %v641 = vmul.f32 %v320, %v596
          %v642 = vmul.f32 %v321, %v596
          %v643 = vmul.f32 %v322, %v597
          %v644 = vmul.f32 %v323, %v597
          %v645 = vmul.f32 %v324, %v598
          %v646 = vmul.f32 %v325, %v598
          %v647 = vmul.f32 %v326, %v599
          %v648 = vmul.f32 %v327, %v599
          %v649 = vmul.f32 %v328, %v600
          %v650 = vmul.f32 %v329, %v600
          %v651 = vmul.f32 %v330, %v601
          %v652 = vmul.f32 %v331, %v601
          %v653 = vmul.f32 %v332, %v602
          %v654 = vmul.f32 %v333, %v602
          %v655 = vmul.f32 %v334, %v603
          %v656 = vmul.f32 %v335, %v603
          %v657 = vmul.f32 %v336, %v604
          %v658 = vmul.f32 %v337, %v604
          %v659 = vmul.f32 %v338, %v605
          %v660 = vmul.f32 %v339, %v605
          %v661 = vmul.f32 %v340, %v606
          %v662 = vmul.f32 %v341, %v606
          %v663 = vmul.f32 %v342, %v607
          %v664 = vmul.f32 %v343, %v607
          %v665 = vmul.f32 %v344, %v608
          %v666 = vmul.f32 %v345, %v608
          %v667 = vmul.f32 %v346, %v609
          %v668 = vmul.f32 %v347, %v609
          %v669 = vmul.f32 %v348, %v610
          %v670 = vmul.f32 %v349, %v610
          %v671 = vmul.f32 %v350, %v611
          %v672 = vmul.f32 %v351, %v611
          %v673 = vmul.f32 %v352, %v612
          %v674 = vmul.f32 %v353, %v612
          %v675 = vmul.f32 %v354, %v613
          %v676 = vmul.f32 %v355, %v613
          %v677 = vmul.f32 %v356, %v614
          %v678 = vmul.f32 %v357, %v614
          %v679 = vpack.c.bf16 %v617, %v615
          %v680 = vpack.c.bf16 %v618, %v616
          %v681 = vpack.c.bf16 %v621, %v619
          %v682 = vpack.c.bf16 %v622, %v620
          %v683 = vpack.c.bf16 %v625, %v623
          %v684 = vpack.c.bf16 %v626, %v624
          %v685 = vpack.c.bf16 %v629, %v627
          %v686 = vpack.c.bf16 %v630, %v628
          %v687 = vpack.c.bf16 %v633, %v631
          %v688 = vpack.c.bf16 %v634, %v632
          %v689 = vpack.c.bf16 %v637, %v635
          %v690 = vpack.c.bf16 %v638, %v636
          %v691 = vpack.c.bf16 %v641, %v639
          %v692 = vpack.c.bf16 %v642, %v640
          %v693 = vpack.c.bf16 %v645, %v643
          %v694 = vpack.c.bf16 %v646, %v644
          %v695 = vpack.c.bf16 %v649, %v647
          %v696 = vpack.c.bf16 %v650, %v648
          %v697 = vpack.c.bf16 %v653, %v651
          %v698 = vpack.c.bf16 %v654, %v652
          %v699 = vpack.c.bf16 %v657, %v655
          %v700 = vpack.c.bf16 %v658, %v656
          %v701 = vpack.c.bf16 %v661, %v659
          %v702 = vpack.c.bf16 %v662, %v660
          %v703 = vpack.c.bf16 %v665, %v663
          %v704 = vpack.c.bf16 %v666, %v664
          %v705 = vpack.c.bf16 %v669, %v667
          %v706 = vpack.c.bf16 %v670, %v668
          %v707 = vpack.c.bf16 %v673, %v671
          %v708 = vpack.c.bf16 %v674, %v672
          %v709 = vpack.c.bf16 %v677, %v675
          %v710 = vpack.c.bf16 %v678, %v676
          %v711 = vld [vmem:[#allocation6] sm:$0x3]
          %v714 = vunpack.c.l.s4 1966171168
          %v715 = vunpack.c.0.s8 %v714
          %v716 = vlaneseq
          %v717 = vshrl.u32 %v716, 7
          %v718 = vsub.s32 %v715, %v717
          %v719 = vrot.slane %v711, %v718
          %v720 = vcombine.high %v719, %v719
          %v722 = vunpack.c.l.s4 1966171168
          %v723 = vunpack.c.0.s8 %v722
          %v724 = vlaneseq
          %v725 = vshrl.u32 %v724, 7
          %v726 = vsub.s32 %v723, %v725
          %v727 = vrot.slane %v719, %v726
          %v729 = vunpack.c.l.s4 1966171168
          %v730 = vunpack.c.0.s8 %v729
          %v731 = vlaneseq
          %v732 = vshrl.u32 %v731, 7
          %v733 = vsub.s32 %v730, %v732
          %v734 = vrot.slane %v720, %v733
          %v736 = vpack.i.b16 %v727, %v727
          %v738 = vlaneseq
          %v739 = vshrl.u32 %v738, 7
          %v740 = vsub.s32 0, %v739
          %v741 = vrot.slane %v736, %v740
          %v743 = vpack.i.b16 %v734, %v734
          %v745 = vlaneseq
          %v746 = vshrl.u32 %v745, 7
          %v747 = vsub.s32 0, %v746
          %v748 = vrot.slane %v743, %v747
          %v749 = vmul.bf16 %v679, %v741
          %v750 = vmul.bf16 %v680, %v748
          %v751 = vmul.bf16 %v681, %v741
          %v752 = vmul.bf16 %v682, %v748
          %v753 = vmul.bf16 %v683, %v741
          %v754 = vmul.bf16 %v684, %v748
          %v755 = vmul.bf16 %v685, %v741
          %v756 = vmul.bf16 %v686, %v748
          %v757 = vmul.bf16 %v687, %v741
          %v758 = vmul.bf16 %v688, %v748
          %v759 = vmul.bf16 %v689, %v741
          %v760 = vmul.bf16 %v690, %v748
          %v761 = vmul.bf16 %v691, %v741
          %v762 = vmul.bf16 %v692, %v748
          %v763 = vmul.bf16 %v693, %v741
          %v764 = vmul.bf16 %v694, %v748
          %v765 = vmul.bf16 %v695, %v741
          %v766 = vmul.bf16 %v696, %v748
          %v767 = vmul.bf16 %v697, %v741
          %v768 = vmul.bf16 %v698, %v748
          %v769 = vmul.bf16 %v699, %v741
          %v770 = vmul.bf16 %v700, %v748
          %v771 = vmul.bf16 %v701, %v741
          %v772 = vmul.bf16 %v702, %v748
          %v773 = vmul.bf16 %v703, %v741
          %v774 = vmul.bf16 %v704, %v748
          %v775 = vmul.bf16 %v705, %v741
          %v776 = vmul.bf16 %v706, %v748
          %v777 = vmul.bf16 %v707, %v741
          %v778 = vmul.bf16 %v708, %v748
          %v779 = vmul.bf16 %v709, %v741
          %v780 = vmul.bf16 %v710, %v748
          %781 = vst [vmem:[#allocation2] sm:$0xff] %v749
          %782 = vst [vmem:[#allocation2 + $0x8] sm:$0xff] %v750
          %783 = vst [vmem:[#allocation2 + $0x10] sm:$0xff] %v751
          %784 = vst [vmem:[#allocation2 + $0x18] sm:$0xff] %v752
          %785 = vst [vmem:[#allocation2 + $0x20] sm:$0xff] %v753
          %786 = vst [vmem:[#allocation2 + $0x28] sm:$0xff] %v754
          %787 = vst [vmem:[#allocation2 + $0x30] sm:$0xff] %v755
          %788 = vst [vmem:[#allocation2 + $0x38] sm:$0xff] %v756
          %789 = vst [vmem:[#allocation2 + $0x40] sm:$0xff] %v757
          %790 = vst [vmem:[#allocation2 + $0x48] sm:$0xff] %v758
          %791 = vst [vmem:[#allocation2 + $0x50] sm:$0xff] %v759
          %792 = vst [vmem:[#allocation2 + $0x58] sm:$0xff] %v760
          %793 = vst [vmem:[#allocation2 + $0x60] sm:$0xff] %v761
          %794 = vst [vmem:[#allocation2 + $0x68] sm:$0xff] %v762
          %795 = vst [vmem:[#allocation2 + $0x70] sm:$0xff] %v763
          %796 = vst [vmem:[#allocation2 + $0x78] sm:$0xff] %v764
          %797 = vst [vmem:[#allocation2 + $0x80] sm:$0xff] %v765
          %798 = vst [vmem:[#allocation2 + $0x88] sm:$0xff] %v766
          %799 = vst [vmem:[#allocation2 + $0x90] sm:$0xff] %v767
          %800 = vst [vmem:[#allocation2 + $0x98] sm:$0xff] %v768
          %801 = vst [vmem:[#allocation2 + $0xa0] sm:$0xff] %v769
          %802 = vst [vmem:[#allocation2 + $0xa8] sm:$0xff] %v770
          %803 = vst [vmem:[#allocation2 + $0xb0] sm:$0xff] %v771
          %804 = vst [vmem:[#allocation2 + $0xb8] sm:$0xff] %v772
          %805 = vst [vmem:[#allocation2 + $0xc0] sm:$0xff] %v773
          %806 = vst [vmem:[#allocation2 + $0xc8] sm:$0xff] %v774
          %807 = vst [vmem:[#allocation2 + $0xd0] sm:$0xff] %v775
          %808 = vst [vmem:[#allocation2 + $0xd8] sm:$0xff] %v776
          %809 = vst [vmem:[#allocation2 + $0xe0] sm:$0xff] %v777
          %810 = vst [vmem:[#allocation2 + $0xe8] sm:$0xff] %v778
          %811 = vst [vmem:[#allocation2 + $0xf0] sm:$0xff] %v779
          %812 = vst [vmem:[#allocation2 + $0xf8] sm:$0xff] %v780
        $region48: #{tpu_custom_call.1} parent=31 // pred_fallthru
          _
        %v813 = vld [vmem:[#allocation2] sm:$0xff]
        %v814 = vld [vmem:[#allocation2 + $0x8] sm:$0xff]
        %v815 = vld [vmem:[#allocation2 + $0x10] sm:$0xff]
        %v816 = vld [vmem:[#allocation2 + $0x18] sm:$0xff]
        %v817 = vld [vmem:[#allocation2 + $0x20] sm:$0xff]
        %v818 = vld [vmem:[#allocation2 + $0x28] sm:$0xff]
        %v819 = vld [vmem:[#allocation2 + $0x30] sm:$0xff]
        %v820 = vld [vmem:[#allocation2 + $0x38] sm:$0xff]
        %v821 = vld [vmem:[#allocation2 + $0x40] sm:$0xff]
        %v822 = vld [vmem:[#allocation2 + $0x48] sm:$0xff]
        %v823 = vld [vmem:[#allocation2 + $0x50] sm:$0xff]
        %v824 = vld [vmem:[#allocation2 + $0x58] sm:$0xff]
        %v825 = vld [vmem:[#allocation2 + $0x60] sm:$0xff]
        %v826 = vld [vmem:[#allocation2 + $0x68] sm:$0xff]
        %v827 = vld [vmem:[#allocation2 + $0x70] sm:$0xff]
        %v828 = vld [vmem:[#allocation2 + $0x78] sm:$0xff]
        %v829 = vld [vmem:[#allocation2 + $0x80] sm:$0xff]
        %v830 = vld [vmem:[#allocation2 + $0x88] sm:$0xff]
        %v831 = vld [vmem:[#allocation2 + $0x90] sm:$0xff]
        %v832 = vld [vmem:[#allocation2 + $0x98] sm:$0xff]
        %v833 = vld [vmem:[#allocation2 + $0xa0] sm:$0xff]
        %v834 = vld [vmem:[#allocation2 + $0xa8] sm:$0xff]
        %v835 = vld [vmem:[#allocation2 + $0xb0] sm:$0xff]
        %v836 = vld [vmem:[#allocation2 + $0xb8] sm:$0xff]
        %v837 = vld [vmem:[#allocation2 + $0xc0] sm:$0xff]
        %v838 = vld [vmem:[#allocation2 + $0xc8] sm:$0xff]
        %v839 = vld [vmem:[#allocation2 + $0xd0] sm:$0xff]
        %v840 = vld [vmem:[#allocation2 + $0xd8] sm:$0xff]
        %v841 = vld [vmem:[#allocation2 + $0xe0] sm:$0xff]
        %v842 = vld [vmem:[#allocation2 + $0xe8] sm:$0xff]
        %v843 = vld [vmem:[#allocation2 + $0xf0] sm:$0xff]
        %v844 = vld [vmem:[#allocation2 + $0xf8] sm:$0xff]
        %v845 = vld [vmem:[%s226] sm:$0xff]
        %v846 = vld [vmem:[%s226 + $0x8] sm:$0xff]
        %v847 = vld [vmem:[%s226 + $0x10] sm:$0xff]
        %v848 = vld [vmem:[%s226 + $0x18] sm:$0xff]
        %v849 = vld [vmem:[%s226 + $0x20] sm:$0xff]
        %v850 = vld [vmem:[%s226 + $0x28] sm:$0xff]
        %v851 = vld [vmem:[%s226 + $0x30] sm:$0xff]
        %v852 = vld [vmem:[%s226 + $0x38] sm:$0xff]
        %v853 = vld [vmem:[%s226 + $0x40] sm:$0xff]
        %v854 = vld [vmem:[%s226 + $0x48] sm:$0xff]
        %v855 = vld [vmem:[%s226 + $0x50] sm:$0xff]
        %v856 = vld [vmem:[%s226 + $0x58] sm:$0xff]
        %v857 = vld [vmem:[%s226 + $0x60] sm:$0xff]
        %v858 = vld [vmem:[%s226 + $0x68] sm:$0xff]
        %v859 = vld [vmem:[%s226 + $0x70] sm:$0xff]
        %v860 = vld [vmem:[%s226 + $0x78] sm:$0xff]
        %v861 = vld [vmem:[%s226 + $0x80] sm:$0xff]
        %v862 = vld [vmem:[%s226 + $0x88] sm:$0xff]
        %v863 = vld [vmem:[%s226 + $0x90] sm:$0xff]
        %v864 = vld [vmem:[%s226 + $0x98] sm:$0xff]
        %v865 = vld [vmem:[%s226 + $0xa0] sm:$0xff]
        %v866 = vld [vmem:[%s226 + $0xa8] sm:$0xff]
        %v867 = vld [vmem:[%s226 + $0xb0] sm:$0xff]
        %v868 = vld [vmem:[%s226 + $0xb8] sm:$0xff]
        %v869 = vld [vmem:[%s226 + $0xc0] sm:$0xff]
        %v870 = vld [vmem:[%s226 + $0xc8] sm:$0xff]
        %v871 = vld [vmem:[%s226 + $0xd0] sm:$0xff]
        %v872 = vld [vmem:[%s226 + $0xd8] sm:$0xff]
        %v873 = vld [vmem:[%s226 + $0xe0] sm:$0xff]
        %v874 = vld [vmem:[%s226 + $0xe8] sm:$0xff]
        %v875 = vld [vmem:[%s226 + $0xf0] sm:$0xff]
        %v876 = vld [vmem:[%s226 + $0xf8] sm:$0xff]
        %v909 = vunpack.c.l.b16 %v845
        %v910 = vunpack.c.h.b16 %v845
        %v911 = vunpack.c.l.b16 %v846
        %v912 = vunpack.c.h.b16 %v846
        %v913 = vunpack.c.l.b16 %v847
        %v914 = vunpack.c.h.b16 %v847
        %v915 = vunpack.c.l.b16 %v848
        %v916 = vunpack.c.h.b16 %v848
        %v917 = vunpack.c.l.b16 %v849
        %v918 = vunpack.c.h.b16 %v849
        %v919 = vunpack.c.l.b16 %v850
        %v920 = vunpack.c.h.b16 %v850
        %v921 = vunpack.c.l.b16 %v851
        %v922 = vunpack.c.h.b16 %v851
        %v923 = vunpack.c.l.b16 %v852
        %v924 = vunpack.c.h.b16 %v852
        %v925 = vunpack.c.l.b16 %v853
        %v926 = vunpack.c.h.b16 %v853
        %v927 = vunpack.c.l.b16 %v854
        %v928 = vunpack.c.h.b16 %v854
        %v929 = vunpack.c.l.b16 %v855
        %v930 = vunpack.c.h.b16 %v855
        %v931 = vunpack.c.l.b16 %v856
        %v932 = vunpack.c.h.b16 %v856
        %v933 = vunpack.c.l.b16 %v857
        %v934 = vunpack.c.h.b16 %v857
        %v935 = vunpack.c.l.b16 %v858
        %v936 = vunpack.c.h.b16 %v858
        %v937 = vunpack.c.l.b16 %v859
        %v938 = vunpack.c.h.b16 %v859
        %v939 = vunpack.c.l.b16 %v860
        %v940 = vunpack.c.h.b16 %v860
        %v941 = vunpack.c.l.b16 %v861
        %v942 = vunpack.c.h.b16 %v861
        %v943 = vunpack.c.l.b16 %v862
        %v944 = vunpack.c.h.b16 %v862
        %v945 = vunpack.c.l.b16 %v863
        %v946 = vunpack.c.h.b16 %v863
        %v947 = vunpack.c.l.b16 %v864
        %v948 = vunpack.c.h.b16 %v864
        %v949 = vunpack.c.l.b16 %v865
        %v950 = vunpack.c.h.b16 %v865
        %v951 = vunpack.c.l.b16 %v866
        %v952 = vunpack.c.h.b16 %v866
        %v953 = vunpack.c.l.b16 %v867
        %v954 = vunpack.c.h.b16 %v867
        %v955 = vunpack.c.l.b16 %v868
        %v956 = vunpack.c.h.b16 %v868
        %v957 = vunpack.c.l.b16 %v869
        %v958 = vunpack.c.h.b16 %v869
        %v959 = vunpack.c.l.b16 %v870
        %v960 = vunpack.c.h.b16 %v870
        %v961 = vunpack.c.l.b16 %v871
        %v962 = vunpack.c.h.b16 %v871
        %v963 = vunpack.c.l.b16 %v872
        %v964 = vunpack.c.h.b16 %v872
        %v965 = vunpack.c.l.b16 %v873
        %v966 = vunpack.c.h.b16 %v873
        %v967 = vunpack.c.l.b16 %v874
        %v968 = vunpack.c.h.b16 %v874
        %v969 = vunpack.c.l.b16 %v875
        %v970 = vunpack.c.h.b16 %v875
        %v971 = vunpack.c.l.b16 %v876
        %v972 = vunpack.c.h.b16 %v876
        %v973 = vpack.c.b16 %v911, %v909
        %v974 = vpack.c.b16 %v912, %v910
        %v975 = vpack.c.b16 %v915, %v913
        %v976 = vpack.c.b16 %v916, %v914
        %v977 = vpack.c.b16 %v919, %v917
        %v978 = vpack.c.b16 %v920, %v918
        %v979 = vpack.c.b16 %v923, %v921
        %v980 = vpack.c.b16 %v924, %v922
        %v981 = vpack.c.b16 %v927, %v925
        %v982 = vpack.c.b16 %v928, %v926
        %v983 = vpack.c.b16 %v931, %v929
        %v984 = vpack.c.b16 %v932, %v930
        %v985 = vpack.c.b16 %v935, %v933
        %v986 = vpack.c.b16 %v936, %v934
        %v987 = vpack.c.b16 %v939, %v937
        %v988 = vpack.c.b16 %v940, %v938
        %v989 = vpack.c.b16 %v943, %v941
        %v990 = vpack.c.b16 %v944, %v942
        %v991 = vpack.c.b16 %v947, %v945
        %v992 = vpack.c.b16 %v948, %v946
        %v993 = vpack.c.b16 %v951, %v949
        %v994 = vpack.c.b16 %v952, %v950
        %v995 = vpack.c.b16 %v955, %v953
        %v996 = vpack.c.b16 %v956, %v954
        %v997 = vpack.c.b16 %v959, %v957
        %v998 = vpack.c.b16 %v960, %v958
        %v999 = vpack.c.b16 %v963, %v961
        %v1000 = vpack.c.b16 %v964, %v962
        %v1001 = vpack.c.b16 %v967, %v965
        %v1002 = vpack.c.b16 %v968, %v966
        %v1003 = vpack.c.b16 %v971, %v969
        %v1004 = vpack.c.b16 %v972, %v970
        %1037 = vmatprep.subr.bf16.mxu0 %v974
        %1038 = vmatpush1.bf16.msra.mxu0 %v973
        %1039 = vmatprep.subr.bf16.mxu0 %v976
        %1040 = vmatpush1.bf16.msra.mxu0 %v975
        %1041 = vmatprep.subr.bf16.mxu0 %v978
        %1042 = vmatpush1.bf16.msra.mxu0 %v977
        %1043 = vmatprep.subr.bf16.mxu0 %v980
        %1044 = vmatpush1.bf16.msra.mxu0 %v979
        %1045 = vmatprep.subr.bf16.mxu0 %v982
        %1046 = vmatpush1.bf16.msra.mxu0 %v981
        %1047 = vmatprep.subr.bf16.mxu0 %v984
        %1048 = vmatpush1.bf16.msra.mxu0 %v983
        %1049 = vmatprep.subr.bf16.mxu0 %v986
        %1050 = vmatpush1.bf16.msra.mxu0 %v985
        %1051 = vmatprep.subr.bf16.mxu0 %v988
        %1052 = vmatpush1.bf16.msra.mxu0 %v987
        %1053 = vmatprep.subr.bf16.mxu0 %v990
        %1054 = vmatpush1.bf16.msra.mxu0 %v989
        %1055 = vmatprep.subr.bf16.mxu0 %v992
        %1056 = vmatpush1.bf16.msra.mxu0 %v991
        %1057 = vmatprep.subr.bf16.mxu0 %v994
        %1058 = vmatpush1.bf16.msra.mxu0 %v993
        %1059 = vmatprep.subr.bf16.mxu0 %v996
        %1060 = vmatpush1.bf16.msra.mxu0 %v995
        %1061 = vmatprep.subr.bf16.mxu0 %v998
        %1062 = vmatpush1.bf16.msra.mxu0 %v997
        %1063 = vmatprep.subr.bf16.mxu0 %v1000
        %1064 = vmatpush1.bf16.msra.mxu0 %v999
        %1065 = vmatprep.subr.bf16.mxu0 %v1002
        %1066 = vmatpush1.bf16.msra.mxu0 %v1001
        %1067 = vmatprep.subr.bf16.mxu0 %v1004
        %1068 = vmatpush1.bf16.msra.mxu0 %v1003
        %1069 = vmatprep.mubr.bf16.mxu0 %v814
        %1070 = vmatmul.mubr.bf16.gmra.mrb[0].mxu0 %v813
        %v1071 = vpop.f32.mrb[0].mxu0
        %v1072 = vadd.f32 0.0, %v1071
        %v1073 = vpop.f32.mrb[0].mxu0
        %v1074 = vadd.f32 0.0, %v1073
        %v1075 = vpop.f32.mrb[0].mxu0
        %v1076 = vadd.f32 0.0, %v1075
        %v1077 = vpop.f32.mrb[0].mxu0
        %v1078 = vadd.f32 0.0, %v1077
        %1079 = vmatprep.mubr.bf16.mxu0 %v816
        %1080 = vmatmul.mubr.bf16.gmra.mrb[0].mxu0 %v815
        %v1081 = vpop.f32.mrb[0].mxu0
        %v1082 = vadd.f32 0.0, %v1081
        %v1083 = vpop.f32.mrb[0].mxu0
        %v1084 = vadd.f32 0.0, %v1083
        %v1085 = vpop.f32.mrb[0].mxu0
        %v1086 = vadd.f32 0.0, %v1085
        %v1087 = vpop.f32.mrb[0].mxu0
        %v1088 = vadd.f32 0.0, %v1087
        %1089 = vmatprep.mubr.bf16.mxu0 %v818
        %1090 = vmatmul.mubr.bf16.gmra.mrb[0].mxu0 %v817
        %v1091 = vpop.f32.mrb[0].mxu0
        %v1092 = vadd.f32 0.0, %v1091
        %v1093 = vpop.f32.mrb[0].mxu0
        %v1094 = vadd.f32 0.0, %v1093
        %v1095 = vpop.f32.mrb[0].mxu0
        %v1096 = vadd.f32 0.0, %v1095
        %v1097 = vpop.f32.mrb[0].mxu0
        %v1098 = vadd.f32 0.0, %v1097
        %1099 = vmatprep.mubr.bf16.mxu0 %v820
        %1100 = vmatmul.mubr.bf16.gmra.mrb[0].mxu0 %v819
        %v1101 = vpop.f32.mrb[0].mxu0
        %v1102 = vadd.f32 0.0, %v1101
        %v1103 = vpop.f32.mrb[0].mxu0
        %v1104 = vadd.f32 0.0, %v1103
        %v1105 = vpop.f32.mrb[0].mxu0
        %v1106 = vadd.f32 0.0, %v1105
        %v1107 = vpop.f32.mrb[0].mxu0
        %v1108 = vadd.f32 0.0, %v1107
        %1109 = vmatprep.mubr.bf16.mxu0 %v822
        %1110 = vmatmul.mubr.bf16.gmra.mrb[0].mxu0 %v821
        %v1111 = vpop.f32.mrb[0].mxu0
        %v1112 = vadd.f32 0.0, %v1111
        %v1113 = vpop.f32.mrb[0].mxu0
        %v1114 = vadd.f32 0.0, %v1113
        %v1115 = vpop.f32.mrb[0].mxu0
        %v1116 = vadd.f32 0.0, %v1115
        %v1117 = vpop.f32.mrb[0].mxu0
        %v1118 = vadd.f32 0.0, %v1117
        %1119 = vmatprep.mubr.bf16.mxu0 %v824
        %1120 = vmatmul.mubr.bf16.gmra.mrb[0].mxu0 %v823
        %v1121 = vpop.f32.mrb[0].mxu0
        %v1122 = vadd.f32 0.0, %v1121
        %v1123 = vpop.f32.mrb[0].mxu0
        %v1124 = vadd.f32 0.0, %v1123
        %v1125 = vpop.f32.mrb[0].mxu0
        %v1126 = vadd.f32 0.0, %v1125
        %v1127 = vpop.f32.mrb[0].mxu0
        %v1128 = vadd.f32 0.0, %v1127
        %1129 = vmatprep.mubr.bf16.mxu0 %v826
        %1130 = vmatmul.mubr.bf16.gmra.mrb[0].mxu0 %v825
        %v1131 = vpop.f32.mrb[0].mxu0
        %v1132 = vadd.f32 0.0, %v1131
        %v1133 = vpop.f32.mrb[0].mxu0
        %v1134 = vadd.f32 0.0, %v1133
        %v1135 = vpop.f32.mrb[0].mxu0
        %v1136 = vadd.f32 0.0, %v1135
        %v1137 = vpop.f32.mrb[0].mxu0
        %v1138 = vadd.f32 0.0, %v1137
        %1139 = vmatprep.mubr.bf16.mxu0 %v828
        %1140 = vmatmul.mubr.bf16.gmra.mrb[0].mxu0 %v827
        %v1141 = vpop.f32.mrb[0].mxu0
        %v1142 = vadd.f32 0.0, %v1141
        %v1143 = vpop.f32.mrb[0].mxu0
        %v1144 = vadd.f32 0.0, %v1143
        %v1145 = vpop.f32.mrb[0].mxu0
        %v1146 = vadd.f32 0.0, %v1145
        %v1147 = vpop.f32.mrb[0].mxu0
        %v1148 = vadd.f32 0.0, %v1147
        %1149 = vmatprep.mubr.bf16.mxu0 %v830
        %1150 = vmatmul.mubr.bf16.gmra.mrb[0].mxu0 %v829
        %v1151 = vpop.f32.mrb[0].mxu0
        %v1152 = vadd.f32 0.0, %v1151
        %v1153 = vpop.f32.mrb[0].mxu0
        %v1154 = vadd.f32 0.0, %v1153
        %v1155 = vpop.f32.mrb[0].mxu0
        %v1156 = vadd.f32 0.0, %v1155
        %v1157 = vpop.f32.mrb[0].mxu0
        %v1158 = vadd.f32 0.0, %v1157
        %1159 = vmatprep.mubr.bf16.mxu0 %v832
        %1160 = vmatmul.mubr.bf16.gmra.mrb[0].mxu0 %v831
        %v1161 = vpop.f32.mrb[0].mxu0
        %v1162 = vadd.f32 0.0, %v1161
        %v1163 = vpop.f32.mrb[0].mxu0
        %v1164 = vadd.f32 0.0, %v1163
        %v1165 = vpop.f32.mrb[0].mxu0
        %v1166 = vadd.f32 0.0, %v1165
        %v1167 = vpop.f32.mrb[0].mxu0
        %v1168 = vadd.f32 0.0, %v1167
        %1169 = vmatprep.mubr.bf16.mxu0 %v834
        %1170 = vmatmul.mubr.bf16.gmra.mrb[0].mxu0 %v833
        %v1171 = vpop.f32.mrb[0].mxu0
        %v1172 = vadd.f32 0.0, %v1171
        %v1173 = vpop.f32.mrb[0].mxu0
        %v1174 = vadd.f32 0.0, %v1173
        %v1175 = vpop.f32.mrb[0].mxu0
        %v1176 = vadd.f32 0.0, %v1175
        %v1177 = vpop.f32.mrb[0].mxu0
        %v1178 = vadd.f32 0.0, %v1177
        %1179 = vmatprep.mubr.bf16.mxu0 %v836
        %1180 = vmatmul.mubr.bf16.gmra.mrb[0].mxu0 %v835
        %v1181 = vpop.f32.mrb[0].mxu0
        %v1182 = vadd.f32 0.0, %v1181
        %v1183 = vpop.f32.mrb[0].mxu0
        %v1184 = vadd.f32 0.0, %v1183
        %v1185 = vpop.f32.mrb[0].mxu0
        %v1186 = vadd.f32 0.0, %v1185
        %v1187 = vpop.f32.mrb[0].mxu0
        %v1188 = vadd.f32 0.0, %v1187
        %1189 = vmatprep.mubr.bf16.mxu0 %v838
        %1190 = vmatmul.mubr.bf16.gmra.mrb[0].mxu0 %v837
        %v1191 = vpop.f32.mrb[0].mxu0
        %v1192 = vadd.f32 0.0, %v1191
        %v1193 = vpop.f32.mrb[0].mxu0
        %v1194 = vadd.f32 0.0, %v1193
        %v1195 = vpop.f32.mrb[0].mxu0
        %v1196 = vadd.f32 0.0, %v1195
        %v1197 = vpop.f32.mrb[0].mxu0
        %v1198 = vadd.f32 0.0, %v1197
        %1199 = vmatprep.mubr.bf16.mxu0 %v840
        %1200 = vmatmul.mubr.bf16.gmra.mrb[0].mxu0 %v839
        %v1201 = vpop.f32.mrb[0].mxu0
        %v1202 = vadd.f32 0.0, %v1201
        %v1203 = vpop.f32.mrb[0].mxu0
        %v1204 = vadd.f32 0.0, %v1203
        %v1205 = vpop.f32.mrb[0].mxu0
        %v1206 = vadd.f32 0.0, %v1205
        %v1207 = vpop.f32.mrb[0].mxu0
        %v1208 = vadd.f32 0.0, %v1207
        %1209 = vmatprep.mubr.bf16.mxu0 %v842
        %1210 = vmatmul.mubr.bf16.gmra.mrb[0].mxu0 %v841
        %v1211 = vpop.f32.mrb[0].mxu0
        %v1212 = vadd.f32 0.0, %v1211
        %v1213 = vpop.f32.mrb[0].mxu0
        %v1214 = vadd.f32 0.0, %v1213
        %v1215 = vpop.f32.mrb[0].mxu0
        %v1216 = vadd.f32 0.0, %v1215
        %v1217 = vpop.f32.mrb[0].mxu0
        %v1218 = vadd.f32 0.0, %v1217
        %1219 = vmatprep.mubr.bf16.mxu0 %v844
        %1220 = vmatmul.mubr.bf16.gmra.mrb[0].mxu0 %v843
        %v1221 = vpop.f32.mrb[0].mxu0
        %v1222 = vadd.f32 0.0, %v1221
        %v1223 = vpop.f32.mrb[0].mxu0
        %v1224 = vadd.f32 0.0, %v1223
        %v1225 = vpop.f32.mrb[0].mxu0
        %v1226 = vadd.f32 0.0, %v1225
        %v1227 = vpop.f32.mrb[0].mxu0
        %v1228 = vadd.f32 0.0, %v1227
        %1229 = vdwg.mxu0
        %v1230 = vpack.c.bf16 %v1076, %v1072
        %v1231 = vpack.c.bf16 %v1078, %v1074
        %v1232 = vpack.c.bf16 %v1086, %v1082
        %v1233 = vpack.c.bf16 %v1088, %v1084
        %v1234 = vpack.c.bf16 %v1096, %v1092
        %v1235 = vpack.c.bf16 %v1098, %v1094
        %v1236 = vpack.c.bf16 %v1106, %v1102
        %v1237 = vpack.c.bf16 %v1108, %v1104
        %v1238 = vpack.c.bf16 %v1116, %v1112
        %v1239 = vpack.c.bf16 %v1118, %v1114
        %v1240 = vpack.c.bf16 %v1126, %v1122
        %v1241 = vpack.c.bf16 %v1128, %v1124
        %v1242 = vpack.c.bf16 %v1136, %v1132
        %v1243 = vpack.c.bf16 %v1138, %v1134
        %v1244 = vpack.c.bf16 %v1146, %v1142
        %v1245 = vpack.c.bf16 %v1148, %v1144
        %v1246 = vpack.c.bf16 %v1156, %v1152
        %v1247 = vpack.c.bf16 %v1158, %v1154
        %v1248 = vpack.c.bf16 %v1166, %v1162
        %v1249 = vpack.c.bf16 %v1168, %v1164
        %v1250 = vpack.c.bf16 %v1176, %v1172
        %v1251 = vpack.c.bf16 %v1178, %v1174
        %v1252 = vpack.c.bf16 %v1186, %v1182
        %v1253 = vpack.c.bf16 %v1188, %v1184
        %v1254 = vpack.c.bf16 %v1196, %v1192
        %v1255 = vpack.c.bf16 %v1198, %v1194
        %v1256 = vpack.c.bf16 %v1206, %v1202
        %v1257 = vpack.c.bf16 %v1208, %v1204
        %v1258 = vpack.c.bf16 %v1216, %v1212
        %v1259 = vpack.c.bf16 %v1218, %v1214
        %v1260 = vpack.c.bf16 %v1226, %v1222
        %v1261 = vpack.c.bf16 %v1228, %v1224
        %v1294 = vunpack.c.l.b16 %v1230
        %v1295 = vunpack.c.l.b16 %v1231
        %v1296 = vunpack.c.h.b16 %v1230
        %v1297 = vunpack.c.h.b16 %v1231
        %v1298 = vunpack.c.l.b16 %v1232
        %v1299 = vunpack.c.l.b16 %v1233
        %v1300 = vunpack.c.h.b16 %v1232
        %v1301 = vunpack.c.h.b16 %v1233
        %v1302 = vunpack.c.l.b16 %v1234
        %v1303 = vunpack.c.l.b16 %v1235
        %v1304 = vunpack.c.h.b16 %v1234
        %v1305 = vunpack.c.h.b16 %v1235
        %v1306 = vunpack.c.l.b16 %v1236
        %v1307 = vunpack.c.l.b16 %v1237
        %v1308 = vunpack.c.h.b16 %v1236
        %v1309 = vunpack.c.h.b16 %v1237
        %v1310 = vunpack.c.l.b16 %v1238
        %v1311 = vunpack.c.l.b16 %v1239
        %v1312 = vunpack.c.h.b16 %v1238
        %v1313 = vunpack.c.h.b16 %v1239
        %v1314 = vunpack.c.l.b16 %v1240
        %v1315 = vunpack.c.l.b16 %v1241
        %v1316 = vunpack.c.h.b16 %v1240
        %v1317 = vunpack.c.h.b16 %v1241
        %v1318 = vunpack.c.l.b16 %v1242
        %v1319 = vunpack.c.l.b16 %v1243
        %v1320 = vunpack.c.h.b16 %v1242
        %v1321 = vunpack.c.h.b16 %v1243
        %v1322 = vunpack.c.l.b16 %v1244
        %v1323 = vunpack.c.l.b16 %v1245
        %v1324 = vunpack.c.h.b16 %v1244
        %v1325 = vunpack.c.h.b16 %v1245
        %v1326 = vunpack.c.l.b16 %v1246
        %v1327 = vunpack.c.l.b16 %v1247
        %v1328 = vunpack.c.h.b16 %v1246
        %v1329 = vunpack.c.h.b16 %v1247
        %v1330 = vunpack.c.l.b16 %v1248
        %v1331 = vunpack.c.l.b16 %v1249
        %v1332 = vunpack.c.h.b16 %v1248
        %v1333 = vunpack.c.h.b16 %v1249
        %v1334 = vunpack.c.l.b16 %v1250
        %v1335 = vunpack.c.l.b16 %v1251
        %v1336 = vunpack.c.h.b16 %v1250
        %v1337 = vunpack.c.h.b16 %v1251
        %v1338 = vunpack.c.l.b16 %v1252
        %v1339 = vunpack.c.l.b16 %v1253
        %v1340 = vunpack.c.h.b16 %v1252
        %v1341 = vunpack.c.h.b16 %v1253
        %v1342 = vunpack.c.l.b16 %v1254
        %v1343 = vunpack.c.l.b16 %v1255
        %v1344 = vunpack.c.h.b16 %v1254
        %v1345 = vunpack.c.h.b16 %v1255
        %v1346 = vunpack.c.l.b16 %v1256
        %v1347 = vunpack.c.l.b16 %v1257
        %v1348 = vunpack.c.h.b16 %v1256
        %v1349 = vunpack.c.h.b16 %v1257
        %v1350 = vunpack.c.l.b16 %v1258
        %v1351 = vunpack.c.l.b16 %v1259
        %v1352 = vunpack.c.h.b16 %v1258
        %v1353 = vunpack.c.h.b16 %v1259
        %v1354 = vunpack.c.l.b16 %v1260
        %v1355 = vunpack.c.l.b16 %v1261
        %v1356 = vunpack.c.h.b16 %v1260
        %v1357 = vunpack.c.h.b16 %v1261
        %v1358 = vpack.c.b16 %v1295, %v1294
        %v1359 = vpack.c.b16 %v1297, %v1296
        %v1360 = vpack.c.b16 %v1299, %v1298
        %v1361 = vpack.c.b16 %v1301, %v1300
        %v1362 = vpack.c.b16 %v1303, %v1302
        %v1363 = vpack.c.b16 %v1305, %v1304
        %v1364 = vpack.c.b16 %v1307, %v1306
        %v1365 = vpack.c.b16 %v1309, %v1308
        %v1366 = vpack.c.b16 %v1311, %v1310
        %v1367 = vpack.c.b16 %v1313, %v1312
        %v1368 = vpack.c.b16 %v1315, %v1314
        %v1369 = vpack.c.b16 %v1317, %v1316
        %v1370 = vpack.c.b16 %v1319, %v1318
        %v1371 = vpack.c.b16 %v1321, %v1320
        %v1372 = vpack.c.b16 %v1323, %v1322
        %v1373 = vpack.c.b16 %v1325, %v1324
        %v1374 = vpack.c.b16 %v1327, %v1326
        %v1375 = vpack.c.b16 %v1329, %v1328
        %v1376 = vpack.c.b16 %v1331, %v1330
        %v1377 = vpack.c.b16 %v1333, %v1332
        %v1378 = vpack.c.b16 %v1335, %v1334
        %v1379 = vpack.c.b16 %v1337, %v1336
        %v1380 = vpack.c.b16 %v1339, %v1338
        %v1381 = vpack.c.b16 %v1341, %v1340
        %v1382 = vpack.c.b16 %v1343, %v1342
        %v1383 = vpack.c.b16 %v1345, %v1344
        %v1384 = vpack.c.b16 %v1347, %v1346
        %v1385 = vpack.c.b16 %v1349, %v1348
        %v1386 = vpack.c.b16 %v1351, %v1350
        %v1387 = vpack.c.b16 %v1353, %v1352
        %v1388 = vpack.c.b16 %v1355, %v1354
        %v1389 = vpack.c.b16 %v1357, %v1356
        %1422 = vst [vmem:[%s253] sm:$0xff] %v1358
        %1423 = vst [vmem:[%s253 + $0x8] sm:$0xff] %v1359
        %1424 = vst [vmem:[%s253 + $0x10] sm:$0xff] %v1360
        %1425 = vst [vmem:[%s253 + $0x18] sm:$0xff] %v1361
        %1426 = vst [vmem:[%s253 + $0x20] sm:$0xff] %v1362
        %1427 = vst [vmem:[%s253 + $0x28] sm:$0xff] %v1363
        %1428 = vst [vmem:[%s253 + $0x30] sm:$0xff] %v1364
        %1429 = vst [vmem:[%s253 + $0x38] sm:$0xff] %v1365
        %1430 = vst [vmem:[%s253 + $0x40] sm:$0xff] %v1366
        %1431 = vst [vmem:[%s253 + $0x48] sm:$0xff] %v1367
        %1432 = vst [vmem:[%s253 + $0x50] sm:$0xff] %v1368
        %1433 = vst [vmem:[%s253 + $0x58] sm:$0xff] %v1369
        %1434 = vst [vmem:[%s253 + $0x60] sm:$0xff] %v1370
        %1435 = vst [vmem:[%s253 + $0x68] sm:$0xff] %v1371
        %1436 = vst [vmem:[%s253 + $0x70] sm:$0xff] %v1372
        %1437 = vst [vmem:[%s253 + $0x78] sm:$0xff] %v1373
        %1438 = vst [vmem:[%s253 + $0x80] sm:$0xff] %v1374
        %1439 = vst [vmem:[%s253 + $0x88] sm:$0xff] %v1375
        %1440 = vst [vmem:[%s253 + $0x90] sm:$0xff] %v1376
        %1441 = vst [vmem:[%s253 + $0x98] sm:$0xff] %v1377
        %1442 = vst [vmem:[%s253 + $0xa0] sm:$0xff] %v1378
        %1443 = vst [vmem:[%s253 + $0xa8] sm:$0xff] %v1379
        %1444 = vst [vmem:[%s253 + $0xb0] sm:$0xff] %v1380
        %1445 = vst [vmem:[%s253 + $0xb8] sm:$0xff] %v1381
        %1446 = vst [vmem:[%s253 + $0xc0] sm:$0xff] %v1382
        %1447 = vst [vmem:[%s253 + $0xc8] sm:$0xff] %v1383
        %1448 = vst [vmem:[%s253 + $0xd0] sm:$0xff] %v1384
        %1449 = vst [vmem:[%s253 + $0xd8] sm:$0xff] %v1385
        %1450 = vst [vmem:[%s253 + $0xe0] sm:$0xff] %v1386
        %1451 = vst [vmem:[%s253 + $0xe8] sm:$0xff] %v1387
        %1452 = vst [vmem:[%s253 + $0xf0] sm:$0xff] %v1388
        %1453 = vst [vmem:[%s253 + $0xf8] sm:$0xff] %v1389
        %s1454 = sand.u32 %s116, 1
        %s1455 = scalar_lea.sflag [#allocation5], %s1454
        %s1456 = sand.u32 %s116, 1
        %s1457 = smul.addr %s1456, 256
        %s1458 = scalar_lea.vmem [#allocation9], %s1457
        // Predicated region
        $region49: #{tpu_custom_call.1} parent=31 // pred_check
          %p1459 = pneg %p126
        $region50: #{tpu_custom_call.1} parent=31 // pred_check_branch
          %1461 = sbr.rel (%p1459) target = $region52
        $region51: #{tpu_custom_call.1} parent=31 // pred_region
          %s1462 = smul.u32 32, %s25
          %s1463 = smul.u32 2, %s26
          %s1465 = ssub.s32 4096, 4096
          %1466 = vsyncadd %s1455, %s1465
          %s1467 = smul.addr %s1462, 6
          %s1468 = sadd.s32 %s1463, %s1467
          %s1469 = smul.addr %s1468, 64
          %s1470 = scalar_lea.hbm %s3, %s1469
          %s1471 = sshll.u32 %s1458, 4
          %s1472 = int_to_ptr.vmem [resolvable:$true] %s1471
          %1477 = dma.vmem_to_hbm [thread:$0]  %s1472, 4096, %s1470, %s1455, 128, 384, 8
        $region52: #{tpu_custom_call.1} parent=31 // pred_fallthru
          _
      $region32: #{tpu_custom_call.1} parent=5 // pred_fallthru
        _
      %p1478 = scmp.le.s32.totalorder 2, %s16
      // Predicated region
      $region53: #{tpu_custom_call.1} parent=5 // pred_check
        %p1479 = pneg %p1478
      $region54: #{tpu_custom_call.1} parent=5 // pred_check_branch
        %1481 = sbr.rel (%p1479) target = $region56
      $region55: #{tpu_custom_call.1} parent=5 // pred_region
        %s1482 = ssub.s32 %s16, 2
        // Predicated region
        $region57: #{tpu_custom_call.1} parent=55 // pred_check
          %p1483 = pneg %p132
        $region58: #{tpu_custom_call.1} parent=55 // pred_check_branch
          %1485 = sbr.rel (%p1483) target = $region60
        $region59: #{tpu_custom_call.1} parent=55 // pred_region
          %s1486 = sand.u32 %s117, 1
          %s1487 = scalar_lea.sflag [#allocation5], %s1486
          %s1488 = sand.u32 %s117, 1
          %s1489 = smul.addr %s1488, 256
          %s1490 = scalar_lea.vmem [#allocation9], %s1489
          %1491 = dma.done %s1487, 4096
        $region60: #{tpu_custom_call.1} parent=55 // pred_fallthru
          _
      $region56: #{tpu_custom_call.1} parent=5 // pred_fallthru
        _
    $region6: #{tpu_custom_call.1} parent=1 // loop_footer
      %s20 = sadd.s32 1, %s16
    $region7: #{tpu_custom_call.1} parent=1 // loop_footer_branch
      %15 = sbr.rel target = $region3
    $region8: #{tpu_custom_call.1} parent=1 // loop_exit
      _
    %1492 = vsyncpa [#allocation4], 1
    %s1493 = scalar_lea.sflag [#allocation4], 1
    %1494 = vsyncpa %s1493, 1
    %1495 = vsyncpa [#allocation7], 1
    %1496 = vsyncpa [#allocation5], 1
    %s1497 = scalar_lea.sflag [#allocation5], 1
    %1498 = vsyncpa %s1497, 1

</llo_original>
